<compile_context>
chip_gen: v6e
topology: v6e:2x2x1
jax: 0.10.0
libtpu: 0.0.40
codegen_flags: <defaults>
</compile_context>

<pallas_src>
import functools

import jax
import jax.numpy as jnp
import numpy as np
from jax import lax
from jax.experimental import pallas as pl
from jax.experimental.pallas import tpu as pltpu

LANE = 128


def _das_kernel(sx_ref, sy_ref, gx_ref, gy_ref, sig_ref, out_ref, *,
                n_sensors, nt, tile_rows, inv_cdt, t0_over_dt, idx_max):
    """One grid step = one (tile_rows, 128) pixel tile; sensors are reduced in-kernel."""
    gx = gx_ref[...]                                  # (tile_rows, 128) pixel x coords
    gy = gy_ref[...]                                  # (tile_rows, 128) pixel y coords
    # hoisted out of the sensor loop (JAX does not CSE broadcast/iota)
    t_iota = lax.broadcasted_iota(jnp.int32, (nt, LANE), 0)

    out_ref[...] = jnp.zeros_like(out_ref)

    def sensor_body(s, carry):
        sx = sx_ref[s]                                # scalar sensor position (SMEM)
        sy = sy_ref[s]
        # distance = ||pixel - sensor||   (torch.norm(gridF - sensors[batch_idx]))
        dx = gx - sx
        dy = gy - sy
        dist = jnp.sqrt(dx * dx + dy * dy)
        # idx = (dist / c + t0) / dt  with divisions folded into constants
        idx = dist * inv_cdt + t0_over_dt
        idx = jnp.where(idx > idx_max, 0.0, idx)
        idx = jnp.where(idx < 0.0, 0.0, idx)
        d0 = jnp.floor(idx)
        w0 = idx - d0                                 # weight applied at sample d0   (as in torch)
        w1 = (d0 + 1.0) - idx                         # weight applied at sample d0+1
        d0i = d0.astype(jnp.int32)                    # (tile_rows, 128)

        sig_row = sig_ref[pl.ds(s, 1), :]             # (1, nt): this sensor's trace
        # pad the mat-vec's M dimension up to the native 8-sublane tile (the MXU pads
        # M=1 internally anyway; this keeps lowering on the plain 2-D matmul path)
        sig_blk = jnp.broadcast_to(sig_row, (8, nt))

        for r in range(tile_rows):                    # static, fully unrolled
            d0r = d0i[r:r + 1, :]                     # (1, 128), broadcasts along sublanes
            w0r = w0[r:r + 1, :]
            w1r = w1[r:r + 1, :]
            # one-hot interpolation weights over time, (nt, 128), via select chain
            wmat = jnp.where(t_iota == d0r, w0r,
                             jnp.where(t_iota == d0r + 1, w1r, 0.0))
            # contract over time on the MXU: (8, nt) @ (nt, 128) -> (8, 128); every
            # result row is identical, add row 0 to this pixel row of the output.
            prod = jnp.dot(sig_blk, wmat, preferred_element_type=jnp.float32)
            out_ref[pl.ds(r, 1), :] += prod[0:1, :]
        return carry

    lax.fori_loop(0, n_sensors, sensor_body, 0)


def das_forward(x, gridx, gridy, sensors, *, c, t0, dt, t_max,
                batch_size_forward, tile_rows=8):
    """Pallas equivalent of DasModule.forward (interp='linear').

    x:       (1, Ns, NT) sensor time traces
    gridx:   (Nx, Ny) pixel x coordinates
    gridy:   (Nx, Ny) pixel y coordinates
    sensors: (Ns, 2)  sensor positions
    returns: (1, Nx, Ny) reconstructed image
    """
    Nx, Ny = gridx.shape
    P = Nx * Ny
    NT = x.shape[-1]
    Ns = sensors.shape[0]
    # the torch loop only covers full batches of sensors
    n_used = (Ns // batch_size_forward) * batch_size_forward
    if n_used == 0:
        return jnp.zeros((1, Nx, Ny), jnp.float32)

    tile_pix = tile_rows * LANE
    p_pad = pl.cdiv(P, tile_pix) * tile_pix
    n_rows = p_pad // LANE

    gx = gridx.astype(jnp.float32).reshape(-1)
    gy = gridy.astype(jnp.float32).reshape(-1)
    pad = p_pad - P
    if pad:
        # pad with the last valid pixel; padded outputs are dropped below
        gx = jnp.concatenate([gx, jnp.full((pad,), gx[-1], jnp.float32)])
        gy = jnp.concatenate([gy, jnp.full((pad,), gy[-1], jnp.float32)])
    gx = gx.reshape(n_rows, LANE)
    gy = gy.reshape(n_rows, LANE)

    sig = x[0, :n_used, :].astype(jnp.float32)        # (n_used, NT)
    sx = sensors[:n_used, 0].astype(jnp.float32)      # (n_used,)
    sy = sensors[:n_used, 1].astype(jnp.float32)

    kernel = functools.partial(
        _das_kernel, n_sensors=n_used, nt=NT, tile_rows=tile_rows,
        inv_cdt=float(1.0 / (c * dt)), t0_over_dt=float(t0 / dt),
        idx_max=float(t_max / dt))

    out = pl.pallas_call(
        kernel,
        out_shape=jax.ShapeDtypeStruct((n_rows, LANE), jnp.float32),
        grid=(p_pad // tile_pix,),
        in_specs=[
            pl.BlockSpec(memory_space=pltpu.MemorySpace.SMEM),        # sensor x (scalars)
            pl.BlockSpec(memory_space=pltpu.MemorySpace.SMEM),        # sensor y (scalars)
            pl.BlockSpec((tile_rows, LANE), lambda i: (i, 0)),        # pixel x tile
            pl.BlockSpec((tile_rows, LANE), lambda i: (i, 0)),        # pixel y tile
            pl.BlockSpec((n_used, NT), lambda i: (0, 0)),             # signal, resident in VMEM
        ],
        out_specs=pl.BlockSpec((tile_rows, LANE), lambda i: (i, 0)),
        compiler_params=pltpu.CompilerParams(
            dimension_semantics=("parallel",),
            vmem_limit_bytes=48 * 1024 * 1024,
        ),
    )(sx, sy, gx, gy, sig)

    return out.reshape(-1)[:P].reshape(1, Nx, Ny)


def das_reference(x, gridx, gridy, sensors, *, c, t0, dt, t_max, batch_size_forward):
    """Pure-JAX reference mirroring the PyTorch das() forward exactly."""
    Nx, Ny = gridx.shape
    Ns = sensors.shape[0]
    n_used = (Ns // batch_size_forward) * batch_size_forward
    out = jnp.zeros((Nx, Ny), jnp.float32)
    for s in range(n_used):
        dx = gridx - sensors[s, 0]
        dy = gridy - sensors[s, 1]
        dist = jnp.sqrt(dx * dx + dy * dy)
        idx = (dist / c + t0) / dt
        idx = jnp.where(idx > t_max / dt, 0.0, idx)
        idx = jnp.where(idx < 0.0, 0.0, idx)
        d0 = jnp.floor(idx)
        w0 = idx - d0
        w1 = (d0 + 1.0) - idx
        d0i = d0.astype(jnp.int32)
        sig = x[0, s]
        y0 = sig[d0i]
        y1 = sig[d0i + 1]
        out = out + w0 * y0 + w1 * y1
    return out[None]


if __name__ == "__main__":
    key = jax.random.PRNGKey(0)
    kjx, kjy, ksx, ksy, ksig = jax.random.split(key, 5)

    # Small shapes consistent with DasModule.forward: x is (1, Ns, NT), grid is (Nx, Ny).
    Nx, Ny, NT, Ns = 40, 40, 256, 10
    batch_size_forward = 4        # torch loop runs Ns // bsf full batches -> 8 sensors used
    c = 1500.0                    # params['c']
    t0 = 5e-7                     # sensor_array.t0
    dt = 1e-7                     # grid.dt
    t_max = 200.0 * dt            # grid.t_max (keeps d0+1 < NT, as torch.gather requires)

    # imaging grid (metres) with a tiny random jitter so no delay sits exactly on a
    # sample boundary (the module's swapped-weight interpolation is discontinuous there)
    x_axis = jnp.linspace(0.0, 0.02, Nx, dtype=jnp.float32)
    y_axis = jnp.linspace(0.0, 0.02, Ny, dtype=jnp.float32)
    gridx, gridy = jnp.meshgrid(x_axis, y_axis, indexing="ij")
    gridx = gridx + 1e-4 * jax.random.uniform(kjx, gridx.shape, dtype=jnp.float32)
    gridy = gridy + 1e-4 * jax.random.uniform(kjy, gridy.shape, dtype=jnp.float32)

    sensor_x = jax.random.uniform(ksx, (Ns,), jnp.float32, -0.002, 0.022)
    sensor_y = jax.random.uniform(ksy, (Ns,), jnp.float32, -0.006, -0.004)
    sensors = jnp.stack([sensor_x, sensor_y], axis=-1)          # (Ns, 2)

    # sensor traces; values kept exactly bf16-representable so the check is also robust
    # to MXU operand rounding on real hardware
    x = jax.random.uniform(ksig, (1, Ns, NT), jnp.float32, -1.0, 1.0)
    x = x.astype(jnp.bfloat16).astype(jnp.float32)

    out = das_forward(x, gridx, gridy, sensors, c=c, t0=t0, dt=dt, t_max=t_max,
                      batch_size_forward=batch_size_forward)
    out = jax.block_until_ready(out)

    ref = das_reference(x, gridx, gridy, sensors, c=c, t0=t0, dt=dt, t_max=t_max,
                        batch_size_forward=batch_size_forward)

    # --- correctness check --------------------------------------------------------
    # The module's interpolation is discontinuous wherever a delay lands exactly on a
    # sample boundary (or the clamp threshold): ulp-level differences between the
    # kernel and the reference can flip floor() there and cause O(1) differences that
    # are inherent to the spec, not kernel bugs.  Mask those few pixels out and compare
    # the rest with a tolerance that also covers possible MXU operand rounding.
    n_used = (Ns // batch_size_forward) * batch_size_forward
    gx64 = np.asarray(gridx, np.float64).reshape(-1)
    gy64 = np.asarray(gridy, np.float64).reshape(-1)
    s64 = np.asarray(sensors, np.float64)[:n_used]
    dist64 = np.sqrt((gx64[None, :] - s64[:, :1]) ** 2 + (gy64[None, :] - s64[:, 1:2]) ** 2)
    idx64 = (dist64 / c + t0) / dt
    near_int = np.abs(idx64 - np.round(idx64)) < 1e-3
    near_clamp = np.abs(idx64 - t_max / dt) < 1e-3
    safe = ~(near_int | near_clamp).any(axis=0)

    out_np = np.asarray(out).reshape(-1)
    ref_np = np.asarray(ref).reshape(-1)
    assert safe.mean() > 0.8, f"too few boundary-safe pixels to compare: {safe.mean():.3f}"
    np.testing.assert_allclose(out_np[safe], ref_np[safe], rtol=1e-2, atol=5e-2)

    print("KERNEL_OK")
</pallas_src>

<mosaic_0001>
module attributes {stable_mosaic.version = 11 : i64} {
  func.func @_das_kernel(%arg0: i32, %arg1: memref<8xf32, #tpu.memory_space<smem>>, %arg2: memref<8xf32, #tpu.memory_space<smem>>, %arg3: memref<8x128xf32, #tpu.memory_space<vmem>>, %arg4: memref<8x128xf32, #tpu.memory_space<vmem>>, %arg5: memref<8x256xf32, #tpu.memory_space<vmem>>, %arg6: memref<8x128xf32, #tpu.memory_space<vmem>>) attributes {dimension_semantics = [#tpu.dimension_semantics<parallel>], iteration_bounds = array<i64: 2>, scalar_prefetch = 0 : i64, scratch_operands = 0 : i64, tpu.core_type = #tpu.core_type<tc>, window_params = [{transform_indices = @transform_0, window_bounds = array<i64: 8>}, {transform_indices = @transform_1, window_bounds = array<i64: 8>}, {transform_indices = @transform_2, window_bounds = array<i64: 8, 128>}, {transform_indices = @transform_3, window_bounds = array<i64: 8, 128>}, {pipeline_mode = #tpu.pipeline_mode<synchronous>, transform_indices = @transform_4, window_bounds = array<i64: 8, 256>}, {transform_indices = @transform_5, window_bounds = array<i64: 8, 128>}]} {
    %c0 = arith.constant 0 : index
    %c0_0 = arith.constant 0 : index
    %0 = vector.load %arg3[%c0, %c0_0] : memref<8x128xf32, #tpu.memory_space<vmem>>, vector<8x128xf32>
    %c0_1 = arith.constant 0 : index
    %c0_2 = arith.constant 0 : index
    %1 = vector.load %arg4[%c0_1, %c0_2] : memref<8x128xf32, #tpu.memory_space<vmem>>, vector<8x128xf32>
    %2 = tpu.iota {dimensions = array<i32: 0>} : vector<256x128xi32>
    %cst = arith.constant 0.000000e+00 : f32
    %3 = vector.broadcast %cst : f32 to vector<8x128xf32>
    %c0_3 = arith.constant 0 : index
    %c0_4 = arith.constant 0 : index
    %4 = vector.load %arg6[%c0_3, %c0_4] : memref<8x128xf32, #tpu.memory_space<vmem>>, vector<8x128xf32>
    tpu.vector_store %arg6[%c0_3, %c0_4], %3 {strides = array<i32>} : memref<8x128xf32, #tpu.memory_space<vmem>>, vector<8x128xf32>,
    %c0_i32 = arith.constant 0 : i32
    %c8_i32 = arith.constant 8 : i32
    %5 = arith.addi %c0_i32, %c8_i32 : i32
    %c1_i32 = arith.constant 1 : i32
    scf.for %arg7 = %c0_i32 to %5 step %c1_i32  : i32 {
      %6 = arith.index_cast %arg7 : i32 to index
      %7 = memref.load %arg1[%6] : memref<8xf32, #tpu.memory_space<smem>>
      %8 = arith.index_cast %arg7 : i32 to index
      %9 = memref.load %arg2[%8] : memref<8xf32, #tpu.memory_space<smem>>
      %10 = vector.broadcast %7 : f32 to vector<8x128xf32>
      %11 = arith.subf %0, %10 : vector<8x128xf32>
      %12 = vector.broadcast %9 : f32 to vector<8x128xf32>
      %13 = arith.subf %1, %12 : vector<8x128xf32>
      %14 = arith.mulf %11, %11 : vector<8x128xf32>
      %15 = arith.mulf %13, %13 : vector<8x128xf32>
      %16 = arith.addf %14, %15 : vector<8x128xf32>
      %17 = math.sqrt %16 : vector<8x128xf32>
      %cst_6 = arith.constant 6666.6665 : f32
      %18 = vector.broadcast %cst_6 : f32 to vector<8x128xf32>
      %19 = arith.mulf %17, %18 : vector<8x128xf32>
      %cst_7 = arith.constant 5.000000e+00 : f32
      %20 = vector.broadcast %cst_7 : f32 to vector<8x128xf32>
      %21 = arith.addf %19, %20 : vector<8x128xf32>
      %cst_8 = arith.constant 2.000000e+02 : f32
      %22 = vector.broadcast %cst_8 : f32 to vector<8x128xf32>
      %23 = arith.cmpf ogt, %21, %22 : vector<8x128xf32>
      %cst_9 = arith.constant 0.000000e+00 : f32
      %24 = vector.broadcast %cst_9 : f32 to vector<8x128xf32>
      %25 = arith.select %23, %24, %21 : vector<8x128xi1>, vector<8x128xf32>
      %cst_10 = arith.constant 0.000000e+00 : f32
      %26 = vector.broadcast %cst_10 : f32 to vector<8x128xf32>
      %27 = arith.cmpf olt, %25, %26 : vector<8x128xf32>
      %cst_11 = arith.constant 0.000000e+00 : f32
      %28 = vector.broadcast %cst_11 : f32 to vector<8x128xf32>
      %29 = arith.select %27, %28, %25 : vector<8x128xi1>, vector<8x128xf32>
      %30 = math.floor %29 : vector<8x128xf32>
      %31 = arith.subf %29, %30 : vector<8x128xf32>
      %cst_12 = arith.constant 1.000000e+00 : f32
      %32 = vector.broadcast %cst_12 : f32 to vector<8x128xf32>
      %33 = arith.addf %30, %32 : vector<8x128xf32>
      %34 = arith.subf %33, %29 : vector<8x128xf32>
      %35 = arith.fptosi %30 : vector<8x128xf32> to vector<8x128xi32>
      %36 = arith.index_cast %arg7 : i32 to index
      %c0_13 = arith.constant 0 : index
      %37 = vector.load %arg5[%36, %c0_13] : memref<8x256xf32, #tpu.memory_space<vmem>>, vector<1x256xf32>
      %38 = vector.shape_cast %37 : vector<1x256xf32> to vector<1x256xf32>
      %39 = vector.broadcast %38 : vector<1x256xf32> to vector<8x256xf32>
      %40 = vector.extract_strided_slice %35 {offsets = [0, 0], sizes = [1, 128], strides = [1, 1]} : vector<8x128xi32> to vector<1x128xi32>
      %41 = vector.extract_strided_slice %31 {offsets = [0, 0], sizes = [1, 128], strides = [1, 1]} : vector<8x128xf32> to vector<1x128xf32>
      %42 = vector.extract_strided_slice %34 {offsets = [0, 0], sizes = [1, 128], strides = [1, 1]} : vector<8x128xf32> to vector<1x128xf32>
      %43 = vector.broadcast %40 : vector<1x128xi32> to vector<256x128xi32>
      %44 = arith.cmpi eq, %2, %43 : vector<256x128xi32>
      %c1_i32_14 = arith.constant 1 : i32
      %45 = vector.broadcast %c1_i32_14 : i32 to vector<1x128xi32>
      %46 = arith.addi %40, %45 : vector<1x128xi32>
      %47 = vector.broadcast %46 : vector<1x128xi32> to vector<256x128xi32>
      %48 = arith.cmpi eq, %2, %47 : vector<256x128xi32>
      %cst_15 = arith.constant 0.000000e+00 : f32
      %49 = vector.shape_cast %42 : vector<1x128xf32> to vector<1x128xf32>
      %50 = vector.broadcast %49 : vector<1x128xf32> to vector<256x128xf32>
      %51 = vector.broadcast %cst_15 : f32 to vector<256x128xf32>
      %52 = arith.select %48, %50, %51 : vector<256x128xi1>, vector<256x128xf32>
      %53 = vector.shape_cast %41 : vector<1x128xf32> to vector<1x128xf32>
      %54 = vector.broadcast %53 : vector<1x128xf32> to vector<256x128xf32>
      %55 = arith.select %44, %54, %52 : vector<256x128xi1>, vector<256x128xf32>
      %cst_16 = arith.constant dense<0.000000e+00> : vector<8x128xf32>
      %56 = tpu.matmul %39, %55, %cst_16 {dimension_numbers = #tpu.dot_dimension_numbers<[1], [0], [0], [1], [0, 0, 1, 1], [], []>} : vector<8x256xf32>, vector<256x128xf32>, vector<8x128xf32> -> vector<8x128xf32>
      %c0_17 = arith.constant 0 : index
      %c0_18 = arith.constant 0 : index
      %57 = vector.load %arg6[%c0_17, %c0_18] : memref<8x128xf32, #tpu.memory_space<vmem>>, vector<1x128xf32>
      %58 = vector.extract_strided_slice %56 {offsets = [0, 0], sizes = [1, 128], strides = [1, 1]} : vector<8x128xf32> to vector<1x128xf32>
      %59 = arith.addf %57, %58 : vector<1x128xf32>
      %c0_19 = arith.constant 0 : index
      %c0_20 = arith.constant 0 : index
      %60 = vector.load %arg6[%c0_19, %c0_20] : memref<8x128xf32, #tpu.memory_space<vmem>>, vector<1x128xf32>
      tpu.vector_store %arg6[%c0_19, %c0_20], %59 {strides = array<i32>} : memref<8x128xf32, #tpu.memory_space<vmem>>, vector<1x128xf32>,
      %61 = vector.extract_strided_slice %35 {offsets = [1, 0], sizes = [1, 128], strides = [1, 1]} : vector<8x128xi32> to vector<1x128xi32>
      %62 = vector.extract_strided_slice %31 {offsets = [1, 0], sizes = [1, 128], strides = [1, 1]} : vector<8x128xf32> to vector<1x128xf32>
      %63 = vector.extract_strided_slice %34 {offsets = [1, 0], sizes = [1, 128], strides = [1, 1]} : vector<8x128xf32> to vector<1x128xf32>
      %64 = vector.broadcast %61 : vector<1x128xi32> to vector<256x128xi32>
      %65 = arith.cmpi eq, %2, %64 : vector<256x128xi32>
      %c1_i32_21 = arith.constant 1 : i32
      %66 = vector.broadcast %c1_i32_21 : i32 to vector<1x128xi32>
      %67 = arith.addi %61, %66 : vector<1x128xi32>
      %68 = vector.broadcast %67 : vector<1x128xi32> to vector<256x128xi32>
      %69 = arith.cmpi eq, %2, %68 : vector<256x128xi32>
      %cst_22 = arith.constant 0.000000e+00 : f32
      %70 = vector.shape_cast %63 : vector<1x128xf32> to vector<1x128xf32>
      %71 = vector.broadcast %70 : vector<1x128xf32> to vector<256x128xf32>
      %72 = vector.broadcast %cst_22 : f32 to vector<256x128xf32>
      %73 = arith.select %69, %71, %72 : vector<256x128xi1>, vector<256x128xf32>
      %74 = vector.shape_cast %62 : vector<1x128xf32> to vector<1x128xf32>
      %75 = vector.broadcast %74 : vector<1x128xf32> to vector<256x128xf32>
      %76 = arith.select %65, %75, %73 : vector<256x128xi1>, vector<256x128xf32>
      %cst_23 = arith.constant dense<0.000000e+00> : vector<8x128xf32>
      %77 = tpu.matmul %39, %76, %cst_23 {dimension_numbers = #tpu.dot_dimension_numbers<[1], [0], [0], [1], [0, 0, 1, 1], [], []>} : vector<8x256xf32>, vector<256x128xf32>, vector<8x128xf32> -> vector<8x128xf32>
      %c1 = arith.constant 1 : index
      %c0_24 = arith.constant 0 : index
      %78 = vector.load %arg6[%c1, %c0_24] : memref<8x128xf32, #tpu.memory_space<vmem>>, vector<1x128xf32>
      %79 = vector.extract_strided_slice %77 {offsets = [0, 0], sizes = [1, 128], strides = [1, 1]} : vector<8x128xf32> to vector<1x128xf32>
      %80 = arith.addf %78, %79 : vector<1x128xf32>
      %c1_25 = arith.constant 1 : index
      %c0_26 = arith.constant 0 : index
      %81 = vector.load %arg6[%c1_25, %c0_26] : memref<8x128xf32, #tpu.memory_space<vmem>>, vector<1x128xf32>
      tpu.vector_store %arg6[%c1_25, %c0_26], %80 {strides = array<i32>} : memref<8x128xf32, #tpu.memory_space<vmem>>, vector<1x128xf32>,
      %82 = vector.extract_strided_slice %35 {offsets = [2, 0], sizes = [1, 128], strides = [1, 1]} : vector<8x128xi32> to vector<1x128xi32>
      %83 = vector.extract_strided_slice %31 {offsets = [2, 0], sizes = [1, 128], strides = [1, 1]} : vector<8x128xf32> to vector<1x128xf32>
      %84 = vector.extract_strided_slice %34 {offsets = [2, 0], sizes = [1, 128], strides = [1, 1]} : vector<8x128xf32> to vector<1x128xf32>
      %85 = vector.broadcast %82 : vector<1x128xi32> to vector<256x128xi32>
      %86 = arith.cmpi eq, %2, %85 : vector<256x128xi32>
      %c1_i32_27 = arith.constant 1 : i32
      %87 = vector.broadcast %c1_i32_27 : i32 to vector<1x128xi32>
      %88 = arith.addi %82, %87 : vector<1x128xi32>
      %89 = vector.broadcast %88 : vector<1x128xi32> to vector<256x128xi32>
      %90 = arith.cmpi eq, %2, %89 : vector<256x128xi32>
      %cst_28 = arith.constant 0.000000e+00 : f32
      %91 = vector.shape_cast %84 : vector<1x128xf32> to vector<1x128xf32>
      %92 = vector.broadcast %91 : vector<1x128xf32> to vector<256x128xf32>
      %93 = vector.broadcast %cst_28 : f32 to vector<256x128xf32>
      %94 = arith.select %90, %92, %93 : vector<256x128xi1>, vector<256x128xf32>
      %95 = vector.shape_cast %83 : vector<1x128xf32> to vector<1x128xf32>
      %96 = vector.broadcast %95 : vector<1x128xf32> to vector<256x128xf32>
      %97 = arith.select %86, %96, %94 : vector<256x128xi1>, vector<256x128xf32>
      %cst_29 = arith.constant dense<0.000000e+00> : vector<8x128xf32>
      %98 = tpu.matmul %39, %97, %cst_29 {dimension_numbers = #tpu.dot_dimension_numbers<[1], [0], [0], [1], [0, 0, 1, 1], [], []>} : vector<8x256xf32>, vector<256x128xf32>, vector<8x128xf32> -> vector<8x128xf32>
      %c2 = arith.constant 2 : index
      %c0_30 = arith.constant 0 : index
      %99 = vector.load %arg6[%c2, %c0_30] : memref<8x128xf32, #tpu.memory_space<vmem>>, vector<1x128xf32>
      %100 = vector.extract_strided_slice %98 {offsets = [0, 0], sizes = [1, 128], strides = [1, 1]} : vector<8x128xf32> to vector<1x128xf32>
      %101 = arith.addf %99, %100 : vector<1x128xf32>
      %c2_31 = arith.constant 2 : index
      %c0_32 = arith.constant 0 : index
      %102 = vector.load %arg6[%c2_31, %c0_32] : memref<8x128xf32, #tpu.memory_space<vmem>>, vector<1x128xf32>
      tpu.vector_store %arg6[%c2_31, %c0_32], %101 {strides = array<i32>} : memref<8x128xf32, #tpu.memory_space<vmem>>, vector<1x128xf32>,
      %103 = vector.extract_strided_slice %35 {offsets = [3, 0], sizes = [1, 128], strides = [1, 1]} : vector<8x128xi32> to vector<1x128xi32>
      %104 = vector.extract_strided_slice %31 {offsets = [3, 0], sizes = [1, 128], strides = [1, 1]} : vector<8x128xf32> to vector<1x128xf32>
      %105 = vector.extract_strided_slice %34 {offsets = [3, 0], sizes = [1, 128], strides = [1, 1]} : vector<8x128xf32> to vector<1x128xf32>
      %106 = vector.broadcast %103 : vector<1x128xi32> to vector<256x128xi32>
      %107 = arith.cmpi eq, %2, %106 : vector<256x128xi32>
      %c1_i32_33 = arith.constant 1 : i32
      %108 = vector.broadcast %c1_i32_33 : i32 to vector<1x128xi32>
      %109 = arith.addi %103, %108 : vector<1x128xi32>
      %110 = vector.broadcast %109 : vector<1x128xi32> to vector<256x128xi32>
      %111 = arith.cmpi eq, %2, %110 : vector<256x128xi32>
      %cst_34 = arith.constant 0.000000e+00 : f32
      %112 = vector.shape_cast %105 : vector<1x128xf32> to vector<1x128xf32>
      %113 = vector.broadcast %112 : vector<1x128xf32> to vector<256x128xf32>
      %114 = vector.broadcast %cst_34 : f32 to vector<256x128xf32>
      %115 = arith.select %111, %113, %114 : vector<256x128xi1>, vector<256x128xf32>
      %116 = vector.shape_cast %104 : vector<1x128xf32> to vector<1x128xf32>
      %117 = vector.broadcast %116 : vector<1x128xf32> to vector<256x128xf32>
      %118 = arith.select %107, %117, %115 : vector<256x128xi1>, vector<256x128xf32>
      %cst_35 = arith.constant dense<0.000000e+00> : vector<8x128xf32>
      %119 = tpu.matmul %39, %118, %cst_35 {dimension_numbers = #tpu.dot_dimension_numbers<[1], [0], [0], [1], [0, 0, 1, 1], [], []>} : vector<8x256xf32>, vector<256x128xf32>, vector<8x128xf32> -> vector<8x128xf32>
      %c3 = arith.constant 3 : index
      %c0_36 = arith.constant 0 : index
      %120 = vector.load %arg6[%c3, %c0_36] : memref<8x128xf32, #tpu.memory_space<vmem>>, vector<1x128xf32>
      %121 = vector.extract_strided_slice %119 {offsets = [0, 0], sizes = [1, 128], strides = [1, 1]} : vector<8x128xf32> to vector<1x128xf32>
      %122 = arith.addf %120, %121 : vector<1x128xf32>
      %c3_37 = arith.constant 3 : index
      %c0_38 = arith.constant 0 : index
      %123 = vector.load %arg6[%c3_37, %c0_38] : memref<8x128xf32, #tpu.memory_space<vmem>>, vector<1x128xf32>
      tpu.vector_store %arg6[%c3_37, %c0_38], %122 {strides = array<i32>} : memref<8x128xf32, #tpu.memory_space<vmem>>, vector<1x128xf32>,
      %124 = vector.extract_strided_slice %35 {offsets = [4, 0], sizes = [1, 128], strides = [1, 1]} : vector<8x128xi32> to vector<1x128xi32>
      %125 = vector.extract_strided_slice %31 {offsets = [4, 0], sizes = [1, 128], strides = [1, 1]} : vector<8x128xf32> to vector<1x128xf32>
      %126 = vector.extract_strided_slice %34 {offsets = [4, 0], sizes = [1, 128], strides = [1, 1]} : vector<8x128xf32> to vector<1x128xf32>
      %127 = vector.broadcast %124 : vector<1x128xi32> to vector<256x128xi32>
      %128 = arith.cmpi eq, %2, %127 : vector<256x128xi32>
      %c1_i32_39 = arith.constant 1 : i32
      %129 = vector.broadcast %c1_i32_39 : i32 to vector<1x128xi32>
      %130 = arith.addi %124, %129 : vector<1x128xi32>
      %131 = vector.broadcast %130 : vector<1x128xi32> to vector<256x128xi32>
      %132 = arith.cmpi eq, %2, %131 : vector<256x128xi32>
      %cst_40 = arith.constant 0.000000e+00 : f32
      %133 = vector.shape_cast %126 : vector<1x128xf32> to vector<1x128xf32>
      %134 = vector.broadcast %133 : vector<1x128xf32> to vector<256x128xf32>
      %135 = vector.broadcast %cst_40 : f32 to vector<256x128xf32>
      %136 = arith.select %132, %134, %135 : vector<256x128xi1>, vector<256x128xf32>
      %137 = vector.shape_cast %125 : vector<1x128xf32> to vector<1x128xf32>
      %138 = vector.broadcast %137 : vector<1x128xf32> to vector<256x128xf32>
      %139 = arith.select %128, %138, %136 : vector<256x128xi1>, vector<256x128xf32>
      %cst_41 = arith.constant dense<0.000000e+00> : vector<8x128xf32>
      %140 = tpu.matmul %39, %139, %cst_41 {dimension_numbers = #tpu.dot_dimension_numbers<[1], [0], [0], [1], [0, 0, 1, 1], [], []>} : vector<8x256xf32>, vector<256x128xf32>, vector<8x128xf32> -> vector<8x128xf32>
      %c4 = arith.constant 4 : index
      %c0_42 = arith.constant 0 : index
      %141 = vector.load %arg6[%c4, %c0_42] : memref<8x128xf32, #tpu.memory_space<vmem>>, vector<1x128xf32>
      %142 = vector.extract_strided_slice %140 {offsets = [0, 0], sizes = [1, 128], strides = [1, 1]} : vector<8x128xf32> to vector<1x128xf32>
      %143 = arith.addf %141, %142 : vector<1x128xf32>
      %c4_43 = arith.constant 4 : index
      %c0_44 = arith.constant 0 : index
      %144 = vector.load %arg6[%c4_43, %c0_44] : memref<8x128xf32, #tpu.memory_space<vmem>>, vector<1x128xf32>
      tpu.vector_store %arg6[%c4_43, %c0_44], %143 {strides = array<i32>} : memref<8x128xf32, #tpu.memory_space<vmem>>, vector<1x128xf32>,
      %145 = vector.extract_strided_slice %35 {offsets = [5, 0], sizes = [1, 128], strides = [1, 1]} : vector<8x128xi32> to vector<1x128xi32>
      %146 = vector.extract_strided_slice %31 {offsets = [5, 0], sizes = [1, 128], strides = [1, 1]} : vector<8x128xf32> to vector<1x128xf32>
      %147 = vector.extract_strided_slice %34 {offsets = [5, 0], sizes = [1, 128], strides = [1, 1]} : vector<8x128xf32> to vector<1x128xf32>
      %148 = vector.broadcast %145 : vector<1x128xi32> to vector<256x128xi32>
      %149 = arith.cmpi eq, %2, %148 : vector<256x128xi32>
      %c1_i32_45 = arith.constant 1 : i32
      %150 = vector.broadcast %c1_i32_45 : i32 to vector<1x128xi32>
      %151 = arith.addi %145, %150 : vector<1x128xi32>
      %152 = vector.broadcast %151 : vector<1x128xi32> to vector<256x128xi32>
      %153 = arith.cmpi eq, %2, %152 : vector<256x128xi32>
      %cst_46 = arith.constant 0.000000e+00 : f32
      %154 = vector.shape_cast %147 : vector<1x128xf32> to vector<1x128xf32>
      %155 = vector.broadcast %154 : vector<1x128xf32> to vector<256x128xf32>
      %156 = vector.broadcast %cst_46 : f32 to vector<256x128xf32>
      %157 = arith.select %153, %155, %156 : vector<256x128xi1>, vector<256x128xf32>
      %158 = vector.shape_cast %146 : vector<1x128xf32> to vector<1x128xf32>
      %159 = vector.broadcast %158 : vector<1x128xf32> to vector<256x128xf32>
      %160 = arith.select %149, %159, %157 : vector<256x128xi1>, vector<256x128xf32>
      %cst_47 = arith.constant dense<0.000000e+00> : vector<8x128xf32>
      %161 = tpu.matmul %39, %160, %cst_47 {dimension_numbers = #tpu.dot_dimension_numbers<[1], [0], [0], [1], [0, 0, 1, 1], [], []>} : vector<8x256xf32>, vector<256x128xf32>, vector<8x128xf32> -> vector<8x128xf32>
      %c5 = arith.constant 5 : index
      %c0_48 = arith.constant 0 : index
      %162 = vector.load %arg6[%c5, %c0_48] : memref<8x128xf32, #tpu.memory_space<vmem>>, vector<1x128xf32>
      %163 = vector.extract_strided_slice %161 {offsets = [0, 0], sizes = [1, 128], strides = [1, 1]} : vector<8x128xf32> to vector<1x128xf32>
      %164 = arith.addf %162, %163 : vector<1x128xf32>
      %c5_49 = arith.constant 5 : index
      %c0_50 = arith.constant 0 : index
      %165 = vector.load %arg6[%c5_49, %c0_50] : memref<8x128xf32, #tpu.memory_space<vmem>>, vector<1x128xf32>
      tpu.vector_store %arg6[%c5_49, %c0_50], %164 {strides = array<i32>} : memref<8x128xf32, #tpu.memory_space<vmem>>, vector<1x128xf32>,
      %166 = vector.extract_strided_slice %35 {offsets = [6, 0], sizes = [1, 128], strides = [1, 1]} : vector<8x128xi32> to vector<1x128xi32>
      %167 = vector.extract_strided_slice %31 {offsets = [6, 0], sizes = [1, 128], strides = [1, 1]} : vector<8x128xf32> to vector<1x128xf32>
      %168 = vector.extract_strided_slice %34 {offsets = [6, 0], sizes = [1, 128], strides = [1, 1]} : vector<8x128xf32> to vector<1x128xf32>
      %169 = vector.broadcast %166 : vector<1x128xi32> to vector<256x128xi32>
      %170 = arith.cmpi eq, %2, %169 : vector<256x128xi32>
      %c1_i32_51 = arith.constant 1 : i32
      %171 = vector.broadcast %c1_i32_51 : i32 to vector<1x128xi32>
      %172 = arith.addi %166, %171 : vector<1x128xi32>
      %173 = vector.broadcast %172 : vector<1x128xi32> to vector<256x128xi32>
      %174 = arith.cmpi eq, %2, %173 : vector<256x128xi32>
      %cst_52 = arith.constant 0.000000e+00 : f32
      %175 = vector.shape_cast %168 : vector<1x128xf32> to vector<1x128xf32>
      %176 = vector.broadcast %175 : vector<1x128xf32> to vector<256x128xf32>
      %177 = vector.broadcast %cst_52 : f32 to vector<256x128xf32>
      %178 = arith.select %174, %176, %177 : vector<256x128xi1>, vector<256x128xf32>
      %179 = vector.shape_cast %167 : vector<1x128xf32> to vector<1x128xf32>
      %180 = vector.broadcast %179 : vector<1x128xf32> to vector<256x128xf32>
      %181 = arith.select %170, %180, %178 : vector<256x128xi1>, vector<256x128xf32>
      %cst_53 = arith.constant dense<0.000000e+00> : vector<8x128xf32>
      %182 = tpu.matmul %39, %181, %cst_53 {dimension_numbers = #tpu.dot_dimension_numbers<[1], [0], [0], [1], [0, 0, 1, 1], [], []>} : vector<8x256xf32>, vector<256x128xf32>, vector<8x128xf32> -> vector<8x128xf32>
      %c6 = arith.constant 6 : index
      %c0_54 = arith.constant 0 : index
      %183 = vector.load %arg6[%c6, %c0_54] : memref<8x128xf32, #tpu.memory_space<vmem>>, vector<1x128xf32>
      %184 = vector.extract_strided_slice %182 {offsets = [0, 0], sizes = [1, 128], strides = [1, 1]} : vector<8x128xf32> to vector<1x128xf32>
      %185 = arith.addf %183, %184 : vector<1x128xf32>
      %c6_55 = arith.constant 6 : index
      %c0_56 = arith.constant 0 : index
      %186 = vector.load %arg6[%c6_55, %c0_56] : memref<8x128xf32, #tpu.memory_space<vmem>>, vector<1x128xf32>
      tpu.vector_store %arg6[%c6_55, %c0_56], %185 {strides = array<i32>} : memref<8x128xf32, #tpu.memory_space<vmem>>, vector<1x128xf32>,
      %187 = vector.extract_strided_slice %35 {offsets = [7, 0], sizes = [1, 128], strides = [1, 1]} : vector<8x128xi32> to vector<1x128xi32>
      %188 = vector.extract_strided_slice %31 {offsets = [7, 0], sizes = [1, 128], strides = [1, 1]} : vector<8x128xf32> to vector<1x128xf32>
      %189 = vector.extract_strided_slice %34 {offsets = [7, 0], sizes = [1, 128], strides = [1, 1]} : vector<8x128xf32> to vector<1x128xf32>
      %190 = vector.broadcast %187 : vector<1x128xi32> to vector<256x128xi32>
      %191 = arith.cmpi eq, %2, %190 : vector<256x128xi32>
      %c1_i32_57 = arith.constant 1 : i32
      %192 = vector.broadcast %c1_i32_57 : i32 to vector<1x128xi32>
      %193 = arith.addi %187, %192 : vector<1x128xi32>
      %194 = vector.broadcast %193 : vector<1x128xi32> to vector<256x128xi32>
      %195 = arith.cmpi eq, %2, %194 : vector<256x128xi32>
      %cst_58 = arith.constant 0.000000e+00 : f32
      %196 = vector.shape_cast %189 : vector<1x128xf32> to vector<1x128xf32>
      %197 = vector.broadcast %196 : vector<1x128xf32> to vector<256x128xf32>
      %198 = vector.broadcast %cst_58 : f32 to vector<256x128xf32>
      %199 = arith.select %195, %197, %198 : vector<256x128xi1>, vector<256x128xf32>
      %200 = vector.shape_cast %188 : vector<1x128xf32> to vector<1x128xf32>
      %201 = vector.broadcast %200 : vector<1x128xf32> to vector<256x128xf32>
      %202 = arith.select %191, %201, %199 : vector<256x128xi1>, vector<256x128xf32>
      %cst_59 = arith.constant dense<0.000000e+00> : vector<8x128xf32>
      %203 = tpu.matmul %39, %202, %cst_59 {dimension_numbers = #tpu.dot_dimension_numbers<[1], [0], [0], [1], [0, 0, 1, 1], [], []>} : vector<8x256xf32>, vector<256x128xf32>, vector<8x128xf32> -> vector<8x128xf32>
      %c7 = arith.constant 7 : index
      %c0_60 = arith.constant 0 : index
      %204 = vector.load %arg6[%c7, %c0_60] : memref<8x128xf32, #tpu.memory_space<vmem>>, vector<1x128xf32>
      %205 = vector.extract_strided_slice %203 {offsets = [0, 0], sizes = [1, 128], strides = [1, 1]} : vector<8x128xf32> to vector<1x128xf32>
      %206 = arith.addf %204, %205 : vector<1x128xf32>
      %c7_61 = arith.constant 7 : index
      %c0_62 = arith.constant 0 : index
      %207 = vector.load %arg6[%c7_61, %c0_62] : memref<8x128xf32, #tpu.memory_space<vmem>>, vector<1x128xf32>
      tpu.vector_store %arg6[%c7_61, %c0_62], %206 {strides = array<i32>} : memref<8x128xf32, #tpu.memory_space<vmem>>, vector<1x128xf32>,
    }
    %c8_i32_5 = arith.constant 8 : i32
    return
  }
  func.func @transform_0(%arg0: i32) -> i32 {
    %c0_i32 = arith.constant 0 : i32
    %c0_i32_0 = arith.constant 0 : i32
    return %c0_i32 : i32
  }
  func.func @transform_1(%arg0: i32) -> i32 {
    %c0_i32 = arith.constant 0 : i32
    %c0_i32_0 = arith.constant 0 : i32
    return %c0_i32 : i32
  }
  func.func @transform_2(%arg0: i32) -> (i32, i32) {
    %c0_i32 = arith.constant 0 : i32
    %c0_i32_0 = arith.constant 0 : i32
    return %arg0, %c0_i32 : i32, i32
  }
  func.func @transform_3(%arg0: i32) -> (i32, i32) {
    %c0_i32 = arith.constant 0 : i32
    %c0_i32_0 = arith.constant 0 : i32
    return %arg0, %c0_i32 : i32, i32
  }
  func.func @transform_4(%arg0: i32) -> (i32, i32) {
    %c0_i32 = arith.constant 0 : i32
    %c0_i32_0 = arith.constant 0 : i32
    %c0_i32_1 = arith.constant 0 : i32
    return %c0_i32, %c0_i32_0 : i32, i32
  }
  func.func @transform_5(%arg0: i32) -> (i32, i32) {
    %c0_i32 = arith.constant 0 : i32
    %c0_i32_0 = arith.constant 0 : i32
    return %arg0, %c0_i32 : i32, i32
  }
}

</mosaic_0001>

<llo_original>
// kernel: tpu_custom_call.1
$region0: #{tpu_custom_call.1}
  #allocation0 [shape = 'u32[]', space=smem, size = 0x4, offset = 0x4, fixed_abs, tag = 'smem constant byte address 0x4 - core index']
  #allocation1 [shape = 'u32[144,128]{1,0:T(1,128)}', space=vmem, size = 0x12000, scoped, tag = 'internal scratch']
  %s0 = inlined_call_operand.hbm [shape: f32[8], index: 0, kind: input, shape index: {}]
  %s1 = inlined_call_operand.vmem [shape: f32[8], index: 1, kind: input, shape index: {}]
  %s2 = inlined_call_operand.hbm [shape: f32[16,128], index: 2, kind: input, shape index: {}]
  %s3 = inlined_call_operand.hbm [shape: f32[16,128], index: 3, kind: input, shape index: {}]
  %s4 = inlined_call_operand.hbm [shape: f32[8,256], index: 4, kind: input, shape index: {}]
  %s5 = inlined_call_operand.hbm [shape: f32[16,128], index: 5, kind: output, shape index: {}]
  %s6 = sld [smem:[#allocation0]]
  $region80: #{tpu_custom_call.1} parent=0
    _
  %s8 = ssub.s32 1, %s6
  %s9 = scalar_select 0, %s8, %s6
  $region1: #{tpu_custom_call.1} parent=0
    #allocation2 [shape = 'u8[512]{0}', space=smem, size = 0x200, scoped, tag = 'input window, operand 0, single buffered']
    #allocation3 [shape = 's32[2]{0}', space=sflag, size = 0x8, scoped, tag = 'scoped memory for tpu_custom_call.1']
    #allocation4 [shape = 's32[2]{0}', space=sflag, size = 0x8, scoped, tag = 'scoped memory for tpu_custom_call.1']
    #allocation5 [shape = 's32[2]{0}', space=sflag, size = 0x8, scoped, tag = 'scoped memory for tpu_custom_call.1']
    #allocation6 [shape = 's32[2]{0}', space=sflag, size = 0x8, scoped, tag = 'scoped memory for tpu_custom_call.1']
    #allocation7 [shape = 'u8[512]{0}', space=smem, size = 0x200, scoped, tag = 'input window, operand 1, single buffered']
    #allocation8 [shape = 'u8[8192]{0}', space=vmem, size = 0x2000, scoped, tag = 'input window, operand 2']
    #allocation9 [shape = 'u8[8192]{0}', space=vmem, size = 0x2000, scoped, tag = 'input window, operand 3']
    #allocation10 [shape = 's32[2]{0}', space=sflag, size = 0x8, scoped, tag = 'scoped memory for tpu_custom_call.1']
    #allocation11 [shape = 'u8[8192]{0}', space=vmem, size = 0x2000, scoped, tag = 'input window, operand 4, single buffered']
    #allocation12 [shape = 'u8[8192]{0}', space=vmem, size = 0x2000, scoped, tag = 'output window, operand 0']
    %10 = vsyncpa [#allocation5], 0
    %11 = vsyncpa [#allocation6], 0
    %12 = vsyncpa [#allocation3], 0
    %s13 = scalar_lea.sflag [#allocation3], 1
    %14 = vsyncpa %s13, 0
    %15 = vsyncpa [#allocation10], 0
    %s16 = scalar_lea.sflag [#allocation10], 1
    %17 = vsyncpa %s16, 0
    %18 = vsyncpa [#allocation4], 0
    %s19 = scalar_lea.sflag [#allocation4], 1
    %20 = vsyncpa %s19, 0
    loop: start=0, step=1, limit=4
    $region2: #{tpu_custom_call.1} parent=1 // loop_pre_header
      _
    $region3: #{tpu_custom_call.1} parent=1 // loop_header
      %s22 = sphi 0, %s26
      %p23 = scmp.ge.s32.totalorder %s22, 4
      %s30 = sphi 0, %s30
      %s32 = sphi 0, %s30
      %s33 = sphi 0, %s32
      %s47 = sphi 0, %s33
      %s51 = sphi 0, %s51
      %s53 = sphi 0, %s51
      %s54 = sphi 0, %s53
      %s68 = sphi 0, %s54
      %s74 = sphi 0, %s76
      %s77 = sphi 0, %s74
      %s78 = sphi 0, %s77
      %s94 = sphi 0, %s78
      %s100 = sphi 0, %s102
      %s103 = sphi 0, %s100
      %s104 = sphi 0, %s103
      %s120 = sphi 0, %s104
      %s124 = sphi 0, %s124
      %s126 = sphi 0, %s124
      %s127 = sphi 0, %s126
      %s141 = sphi 0, %s127
      %s147 = sphi 0, %s149
      %s150 = sphi 0, %s147
      %s151 = sphi 0, %s150
      %s167 = sphi 0, %s151
    $region4: #{tpu_custom_call.1} parent=1 // loop_header_branch
      %25 = sbr.rel (%p23) target = $region8
    $region5: #{tpu_custom_call.1} parent=1 // loop_body
      %s27 = ssub.s32 %s22, 1
      %s28 = ssub.s32 %s22, 2
      %s29 = sadd.s32 %s22, 1
      %s31 = sadd.s32 %s30, 1
      %p34 = scmp.eq.s32.totalorder %s22, 1
      %p35 = scmp.ne.s32.totalorder %s30, %s32
      %p36 = scmp.eq.s32.totalorder %s22, 0
      %p37 = por %p35, %p36
      %p38 = scmp.ne.s32.totalorder %s30, %s32
      %p39 = scmp.eq.s32.totalorder %s27, 1
      %p40 = por %p38, %p39
      %p41 = scmp.ne.s32.totalorder %s32, %s33
      %p42 = scmp.eq.s32.totalorder %s27, 0
      %p43 = por %p41, %p42
      %p44 = scmp.ne.s32.totalorder %s32, %s33
      %p45 = scmp.eq.s32.totalorder %s28, 1
      %p46 = por %p44, %p45
      %p48 = scmp.ne.s32.totalorder %s33, %s47
      %p49 = scmp.eq.s32.totalorder %s28, 0
      %p50 = por %p48, %p49
      %s52 = sadd.s32 %s51, 1
      %p55 = scmp.eq.s32.totalorder %s22, 1
      %p56 = scmp.ne.s32.totalorder %s51, %s53
      %p57 = scmp.eq.s32.totalorder %s22, 0
      %p58 = por %p56, %p57
      %p59 = scmp.ne.s32.totalorder %s51, %s53
      %p60 = scmp.eq.s32.totalorder %s27, 1
      %p61 = por %p59, %p60
      %p62 = scmp.ne.s32.totalorder %s53, %s54
      %p63 = scmp.eq.s32.totalorder %s27, 0
      %p64 = por %p62, %p63
      %p65 = scmp.ne.s32.totalorder %s53, %s54
      %p66 = scmp.eq.s32.totalorder %s28, 1
      %p67 = por %p65, %p66
      %p69 = scmp.ne.s32.totalorder %s54, %s68
      %p70 = scmp.eq.s32.totalorder %s28, 0
      %p71 = por %p69, %p70
      %s72 = ssub.s32 %s22, %s29
      %p73 = scmp.eq.s32.totalorder %s72, 0
      %s75 = sadd.s32 %s74, 1
      %s76 = scalar_select %p73, %s74, %s75
      %p79 = pneg %p73
      %p80 = scmp.eq.s32.totalorder %s22, 1
      %p81 = por %p79, %p80
      %p82 = scmp.ne.s32.totalorder %s74, %s77
      %p83 = scmp.eq.s32.totalorder %s22, 0
      %p84 = por %p82, %p83
      %p85 = scmp.ne.s32.totalorder %s74, %s77
      %p86 = scmp.eq.s32.totalorder %s27, 1
      %p87 = por %p85, %p86
      %p88 = scmp.ne.s32.totalorder %s77, %s78
      %p89 = scmp.eq.s32.totalorder %s27, 0
      %p90 = por %p88, %p89
      %p91 = scmp.ne.s32.totalorder %s77, %s78
      %p92 = scmp.eq.s32.totalorder %s28, 1
      %p93 = por %p91, %p92
      %p95 = scmp.ne.s32.totalorder %s78, %s94
      %p96 = scmp.eq.s32.totalorder %s28, 0
      %p97 = por %p95, %p96
      %s98 = ssub.s32 %s22, %s29
      %p99 = scmp.eq.s32.totalorder %s98, 0
      %s101 = sadd.s32 %s100, 1
      %s102 = scalar_select %p99, %s100, %s101
      %p105 = pneg %p99
      %p106 = scmp.eq.s32.totalorder %s22, 1
      %p107 = por %p105, %p106
      %p108 = scmp.ne.s32.totalorder %s100, %s103
      %p109 = scmp.eq.s32.totalorder %s22, 0
      %p110 = por %p108, %p109
      %p111 = scmp.ne.s32.totalorder %s100, %s103
      %p112 = scmp.eq.s32.totalorder %s27, 1
      %p113 = por %p111, %p112
      %p114 = scmp.ne.s32.totalorder %s103, %s104
      %p115 = scmp.eq.s32.totalorder %s27, 0
      %p116 = por %p114, %p115
      %p117 = scmp.ne.s32.totalorder %s103, %s104
      %p118 = scmp.eq.s32.totalorder %s28, 1
      %p119 = por %p117, %p118
      %p121 = scmp.ne.s32.totalorder %s104, %s120
      %p122 = scmp.eq.s32.totalorder %s28, 0
      %p123 = por %p121, %p122
      %s125 = sadd.s32 %s124, 1
      %p128 = scmp.eq.s32.totalorder %s22, 1
      %p129 = scmp.ne.s32.totalorder %s124, %s126
      %p130 = scmp.eq.s32.totalorder %s22, 0
      %p131 = por %p129, %p130
      %p132 = scmp.ne.s32.totalorder %s124, %s126
      %p133 = scmp.eq.s32.totalorder %s27, 1
      %p134 = por %p132, %p133
      %p135 = scmp.ne.s32.totalorder %s126, %s127
      %p136 = scmp.eq.s32.totalorder %s27, 0
      %p137 = por %p135, %p136
      %p138 = scmp.ne.s32.totalorder %s126, %s127
      %p139 = scmp.eq.s32.totalorder %s28, 1
      %p140 = por %p138, %p139
      %p142 = scmp.ne.s32.totalorder %s127, %s141
      %p143 = scmp.eq.s32.totalorder %s28, 0
      %p144 = por %p142, %p143
      %s145 = ssub.s32 %s22, %s29
      %p146 = scmp.eq.s32.totalorder %s145, 0
      %s148 = sadd.s32 %s147, 1
      %s149 = scalar_select %p146, %s147, %s148
      %p152 = pneg %p146
      %p153 = scmp.eq.s32.totalorder %s22, 1
      %p154 = por %p152, %p153
      %p155 = scmp.ne.s32.totalorder %s147, %s150
      %p156 = scmp.eq.s32.totalorder %s22, 0
      %p157 = por %p155, %p156
      %p158 = scmp.ne.s32.totalorder %s147, %s150
      %p159 = scmp.eq.s32.totalorder %s27, 1
      %p160 = por %p158, %p159
      %p161 = scmp.ne.s32.totalorder %s150, %s151
      %p162 = scmp.eq.s32.totalorder %s27, 0
      %p163 = por %p161, %p162
      %p164 = scmp.ne.s32.totalorder %s150, %s151
      %p165 = scmp.eq.s32.totalorder %s28, 1
      %p166 = por %p164, %p165
      %p168 = scmp.ne.s32.totalorder %s151, %s167
      %p169 = scmp.eq.s32.totalorder %s28, 0
      %p170 = por %p168, %p169
      %p171 = scmp.le.s32.totalorder 1, %s22
      %p172 = scmp.lt.s32.totalorder %s22, 3
      %p173 = pnand %p171, %p172
      %p174 = pneg %p173
      // Predicated region
      $region9: #{tpu_custom_call.1} parent=5 // pred_check
        _
      $region10: #{tpu_custom_call.1} parent=5 // pred_check_branch
        %176 = sbr.rel (%p173) target = $region12
      $region11: #{tpu_custom_call.1} parent=5 // pred_region
        %s177 = ssub.s32 %s22, 1
        // Predicated region
        $region13: #{tpu_custom_call.1} parent=11 // pred_check
          %p178 = pneg %p43
        $region14: #{tpu_custom_call.1} parent=11 // pred_check_branch
          %180 = sbr.rel (%p178) target = $region16
        $region15: #{tpu_custom_call.1} parent=11 // pred_region
          %s182 = ssub.s32 16, 16
          %183 = vsyncadd [#allocation5], %s182
          %186 = dma.hbm_to_smem %s0, 16, [#allocation2], [#allocation5]
        $region16: #{tpu_custom_call.1} parent=11 // pred_fallthru
          _
        // Predicated region
        $region17: #{tpu_custom_call.1} parent=11 // pred_check
          %p187 = pneg %p64
        $region18: #{tpu_custom_call.1} parent=11 // pred_check_branch
          %189 = sbr.rel (%p187) target = $region20
        $region19: #{tpu_custom_call.1} parent=11 // pred_region
          %s191 = ssub.s32 16, 16
          %192 = vsyncadd [#allocation6], %s191
          %s194 = sshll.u32 %s1, 4
          %s195 = int_to_ptr.vmem [resolvable:$true] %s194
          %197 = dma.vmem_to_smem %s195, 16, [#allocation7], [#allocation6]
        $region20: #{tpu_custom_call.1} parent=11 // pred_fallthru
          _
        // Predicated region
        $region21: #{tpu_custom_call.1} parent=11 // pred_check
          %p198 = pneg %p137
        $region22: #{tpu_custom_call.1} parent=11 // pred_check_branch
          %200 = sbr.rel (%p198) target = $region24
        $region23: #{tpu_custom_call.1} parent=11 // pred_region
          %s202 = ssub.s32 256, 256
          %203 = vsyncadd [#allocation10], %s202
          %s205 = sshll.u32 [#allocation11], 4
          %s206 = int_to_ptr.vmem [resolvable:$true] %s205
          %208 = dma.hbm_to_vmem [thread:$0]  %s4, 256, %s206, [#allocation10]
        $region24: #{tpu_custom_call.1} parent=11 // pred_fallthru
          _
      $region12: #{tpu_custom_call.1} parent=5 // pred_fallthru
        _
      %p209 = scmp.lt.s32.totalorder %s22, 2
      // Predicated region
      $region25: #{tpu_custom_call.1} parent=5 // pred_check
        %p210 = pneg %p209
      $region26: #{tpu_custom_call.1} parent=5 // pred_check_branch
        %212 = sbr.rel (%p210) target = $region28
      $region27: #{tpu_custom_call.1} parent=5 // pred_region
        // Predicated region
        $region29: #{tpu_custom_call.1} parent=27 // pred_check
          %p213 = pneg %p84
        $region30: #{tpu_custom_call.1} parent=27 // pred_check_branch
          %215 = sbr.rel (%p213) target = $region32
        $region31: #{tpu_custom_call.1} parent=27 // pred_region
          %s216 = sand.u32 %s74, 1
          %s217 = scalar_lea.sflag [#allocation3], %s216
          %s218 = sand.u32 %s74, 1
          %s219 = smul.addr %s218, 8
          %s220 = scalar_lea.vmem [#allocation8], %s219
          %s222 = ssub.s32 128, 128
          %223 = vsyncadd %s217, %s222
          %s224 = smul.addr %s22, 128
          %s225 = scalar_lea.hbm %s2, %s224
          %s227 = sshll.u32 %s220, 4
          %s228 = int_to_ptr.vmem [resolvable:$true] %s227
          %230 = dma.hbm_to_vmem [thread:$0]  %s225, 128, %s228, %s217
        $region32: #{tpu_custom_call.1} parent=27 // pred_fallthru
          _
        // Predicated region
        $region33: #{tpu_custom_call.1} parent=27 // pred_check
          %p231 = pneg %p110
        $region34: #{tpu_custom_call.1} parent=27 // pred_check_branch
          %233 = sbr.rel (%p231) target = $region36
        $region35: #{tpu_custom_call.1} parent=27 // pred_region
          %s234 = sand.u32 %s22, 1
          %s235 = scalar_lea.sflag [#allocation10], %s234
          %s236 = sand.u32 %s100, 1
          %s237 = smul.addr %s236, 8
          %s238 = scalar_lea.vmem [#allocation9], %s237
          %s240 = ssub.s32 128, 128
          %241 = vsyncadd %s235, %s240
          %s242 = smul.addr %s22, 128
          %s243 = scalar_lea.hbm %s3, %s242
          %s245 = sshll.u32 %s238, 4
          %s246 = int_to_ptr.vmem [resolvable:$true] %s245
          %248 = dma.hbm_to_vmem [thread:$0]  %s243, 128, %s246, %s235
        $region36: #{tpu_custom_call.1} parent=27 // pred_fallthru
          _
      $region28: #{tpu_custom_call.1} parent=5 // pred_fallthru
        _
      %p249 = scmp.le.s32.totalorder 1, %s22
      %p250 = scmp.lt.s32.totalorder %s22, 3
      %p251 = pnand %p249, %p250
      %p252 = pneg %p251
      // Predicated region
      $region37: #{tpu_custom_call.1} parent=5 // pred_check
        _
      $region38: #{tpu_custom_call.1} parent=5 // pred_check_branch
        %254 = sbr.rel (%p251) target = $region40
      $region39: #{tpu_custom_call.1} parent=5 // pred_region
        %s255 = ssub.s32 %s22, 1
        // Predicated region
        $region41: #{tpu_custom_call.1} parent=39 // pred_check
          %p256 = pneg %p43
        $region42: #{tpu_custom_call.1} parent=39 // pred_check_branch
          %258 = sbr.rel (%p256) target = $region44
        $region43: #{tpu_custom_call.1} parent=39 // pred_region
          %259 = dma.done [#allocation5], 16
        $region44: #{tpu_custom_call.1} parent=39 // pred_fallthru
          _
        // Predicated region
        $region45: #{tpu_custom_call.1} parent=39 // pred_check
          %p260 = pneg %p64
        $region46: #{tpu_custom_call.1} parent=39 // pred_check_branch
          %262 = sbr.rel (%p260) target = $region48
        $region47: #{tpu_custom_call.1} parent=39 // pred_region
          %263 = dma.done [#allocation6], 16
        $region48: #{tpu_custom_call.1} parent=39 // pred_fallthru
          _
        %s264 = sand.u32 %s77, 1
        %s265 = scalar_lea.sflag [#allocation3], %s264
        %s266 = sand.u32 %s77, 1
        %s267 = smul.addr %s266, 8
        %s268 = scalar_lea.vmem [#allocation8], %s267
        // Predicated region
        $region49: #{tpu_custom_call.1} parent=39 // pred_check
          %p269 = pneg %p90
        $region50: #{tpu_custom_call.1} parent=39 // pred_check_branch
          %271 = sbr.rel (%p269) target = $region52
        $region51: #{tpu_custom_call.1} parent=39 // pred_region
          %272 = dma.done %s265, 128
        $region52: #{tpu_custom_call.1} parent=39 // pred_fallthru
          _
        %s273 = sand.u32 %s27, 1
        %s274 = scalar_lea.sflag [#allocation10], %s273
        %s275 = sand.u32 %s103, 1
        %s276 = smul.addr %s275, 8
        %s277 = scalar_lea.vmem [#allocation9], %s276
        // Predicated region
        $region53: #{tpu_custom_call.1} parent=39 // pred_check
          %p278 = pneg %p116
        $region54: #{tpu_custom_call.1} parent=39 // pred_check_branch
          %280 = sbr.rel (%p278) target = $region56
        $region55: #{tpu_custom_call.1} parent=39 // pred_region
          %281 = dma.done %s274, 128
        $region56: #{tpu_custom_call.1} parent=39 // pred_fallthru
          _
        // Predicated region
        $region57: #{tpu_custom_call.1} parent=39 // pred_check
          %p282 = pneg %p137
        $region58: #{tpu_custom_call.1} parent=39 // pred_check_branch
          %284 = sbr.rel (%p282) target = $region60
        $region59: #{tpu_custom_call.1} parent=39 // pred_region
          %285 = dma.done [#allocation10], 256
        $region60: #{tpu_custom_call.1} parent=39 // pred_fallthru
          _
        %286 = sfence
        %p287 = pneg %p43
        %p288 = pneg %p40
        %p289 = pneg %p64
        %p290 = pneg %p61
        %s291 = sand.u32 %s77, 1
        %s292 = scalar_lea.sflag [#allocation3], %s291
        %s293 = sand.u32 %s77, 1
        %s294 = smul.addr %s293, 8
        %s295 = scalar_lea.vmem [#allocation8], %s294
        %p296 = pneg %p90
        %p297 = pneg %p87
        %s298 = sand.u32 %s27, 1
        %s299 = scalar_lea.sflag [#allocation10], %s298
        %s300 = sand.u32 %s103, 1
        %s301 = smul.addr %s300, 8
        %s302 = scalar_lea.vmem [#allocation9], %s301
        %p303 = pneg %p116
        %p304 = pneg %p113
        %p305 = pneg %p137
        %p306 = pneg %p134
        %p307 = pneg %p163
        %p308 = pneg %p160
        %s309 = sand.u32 %s150, 1
        %s310 = scalar_lea.sflag [#allocation4], %s309
        %s311 = sand.u32 %s150, 1
        %s312 = smul.addr %s311, 8
        %s313 = scalar_lea.vmem [#allocation12], %s312
        %v314 = vld [vmem:[%s268] sm:$0xff]
        %v315 = vld [vmem:[%s277] sm:$0xff]
        %v316 = vlaneseq
        %v317 = vshrl.u32 %v316, 7
        %v318 = vadd.s32 %v317, 8
        %v319 = vadd.s32 %v317, 16
        %v320 = vadd.s32 %v317, 24
        %v321 = vadd.s32 %v317, 32
        %v322 = vadd.s32 %v317, 40
        %v323 = vadd.s32 %v317, 48
        %v324 = vadd.s32 %v317, 56
        %v325 = vadd.s32 %v317, 64
        %v326 = vadd.s32 %v317, 72
        %v327 = vadd.s32 %v317, 80
        %v328 = vadd.s32 %v317, 88
        %v329 = vadd.s32 %v317, 96
        %v330 = vadd.s32 %v317, 104
        %v331 = vadd.s32 %v317, 112
        %v332 = vadd.s32 %v317, 120
        %v333 = vadd.s32 %v317, 128
        %v334 = vadd.s32 %v317, 136
        %v335 = vadd.s32 %v317, 144
        %v336 = vadd.s32 %v317, 152
        %v337 = vadd.s32 %v317, 160
        %v338 = vadd.s32 %v317, 168
        %v339 = vadd.s32 %v317, 176
        %v340 = vadd.s32 %v317, 184
        %v341 = vadd.s32 %v317, 192
        %v342 = vadd.s32 %v317, 200
        %v343 = vadd.s32 %v317, 208
        %v344 = vadd.s32 %v317, 216
        %v345 = vadd.s32 %v317, 224
        %v346 = vadd.s32 %v317, 232
        %v347 = vadd.s32 %v317, 240
        %v348 = vadd.s32 %v317, 248
        %349 = vst [vmem:[%s313] sm:$0xff] 0.0
        loop: start=0, step=1, limit=8
        $region61: #{tpu_custom_call.1} parent=39 // loop_pre_header
          _
        $region62: #{tpu_custom_call.1} parent=39 // loop_header
          %s351 = sphi 0, %s355
          %p352 = scmp.ge.s32.totalorder %s351, 8
        $region63: #{tpu_custom_call.1} parent=39 // loop_header_branch
          %354 = sbr.rel (%p352) target = $region67
        $region64: #{tpu_custom_call.1} parent=39 // loop_body
          %s356 = sld [smem:[#allocation2 + %s351]]
          %s357 = sld [smem:[#allocation7 + %s351]]
          %v358 = vstv %s356
          %v359 = vsub.f32 %v314, %v358
          %v360 = vstv %s357
          %v361 = vsub.f32 %v315, %v360
          %v362 = vmul.f32 %v359, %v359
          %v363 = vmul.f32 %v361, %v361
          %v364 = vadd.f32 %v362, %v363
          %v365 = vrsqrt.pop %v364
          %v366 = vmul.f32 %v364, %v365
          %vm367 = vcmp.eq.f32.partialorder %v364, inf
          %v368 = vsel %vm367, %v364, %v366
          %vm369 = vcmp.eq.f32.partialorder %v364, 0.0
          %v370 = vand.u32 %v364, 2147483648
          %v371 = vsel %vm369, %v370, %v368
          %v372 = vmul.f32 %v371, 6666.6665
          %v373 = vadd.f32 %v372, 5.0
          %vm374 = vcmp.gt.f32.partialorder %v373, 200.0
          %v375 = vsel %vm374, 0.0, %v373
          %vm376 = vcmp.lt.f32.partialorder %v375, 0.0
          %v377 = vsel %vm376, 0.0, %v375
          %v378 = vfloor.f32 %v377
          %v379 = vsub.f32 %v377, %v378
          %v380 = vadd.f32 %v378, 1.0
          %v381 = vsub.f32 %v380, %v377
          %v382 = vcvt.f32.s32.to.zero.pseudo %v378
          %s383 = sshra.s32 %s351, 3
          %s384 = sand.u32 %s351, 7
          %s385 = sshra.s32 %s351, 3
          %s386 = sand.u32 %s351, 7
          %s387 = smul.u32 %s383, 2
          %s388 = smul.u32 %s387, 8
          %s389 = sadd.s32 %s388, %s386
          %s390 = scalar_lea.vmem [#allocation11], %s389
          %v391 = vld [vmem:[%s390] ss:$8 sm:$0x3]
          %v393 = vlaneseq
          %v394 = vshrl.u32 %v393, 7
          %v395 = vsub.s32 0, %v394
          %v396 = vrot.slane %v391, %v395
          %v397 = vlaneseq
          %v398 = vshrl.u32 %v397, 7
          %v399 = vsub.s32 1, %v398
          %v400 = vrot.slane %v391, %v399
          %v403 = vlaneseq
          %v404 = vshrl.u32 %v403, 7
          %v405 = vsub.s32 0, %v404
          %v406 = vrot.slane %v382, %v405
          %vm407 = vcmp.eq.s32.totalorder %v317, %v406
          %vm408 = vcmp.eq.s32.totalorder %v318, %v406
          %vm409 = vcmp.eq.s32.totalorder %v319, %v406
          %vm410 = vcmp.eq.s32.totalorder %v320, %v406
          %vm411 = vcmp.eq.s32.totalorder %v321, %v406
          %vm412 = vcmp.eq.s32.totalorder %v322, %v406
          %vm413 = vcmp.eq.s32.totalorder %v323, %v406
          %vm414 = vcmp.eq.s32.totalorder %v324, %v406
          %vm415 = vcmp.eq.s32.totalorder %v325, %v406
          %vm416 = vcmp.eq.s32.totalorder %v326, %v406
          %vm417 = vcmp.eq.s32.totalorder %v327, %v406
          %vm418 = vcmp.eq.s32.totalorder %v328, %v406
          %vm419 = vcmp.eq.s32.totalorder %v329, %v406
          %vm420 = vcmp.eq.s32.totalorder %v330, %v406
          %vm421 = vcmp.eq.s32.totalorder %v331, %v406
          %vm422 = vcmp.eq.s32.totalorder %v332, %v406
          %vm423 = vcmp.eq.s32.totalorder %v333, %v406
          %vm424 = vcmp.eq.s32.totalorder %v334, %v406
          %vm425 = vcmp.eq.s32.totalorder %v335, %v406
          %vm426 = vcmp.eq.s32.totalorder %v336, %v406
          %vm427 = vcmp.eq.s32.totalorder %v337, %v406
          %vm428 = vcmp.eq.s32.totalorder %v338, %v406
          %vm429 = vcmp.eq.s32.totalorder %v339, %v406
          %vm430 = vcmp.eq.s32.totalorder %v340, %v406
          %vm431 = vcmp.eq.s32.totalorder %v341, %v406
          %vm432 = vcmp.eq.s32.totalorder %v342, %v406
          %vm433 = vcmp.eq.s32.totalorder %v343, %v406
          %vm434 = vcmp.eq.s32.totalorder %v344, %v406
          %vm435 = vcmp.eq.s32.totalorder %v345, %v406
          %vm436 = vcmp.eq.s32.totalorder %v346, %v406
          %vm437 = vcmp.eq.s32.totalorder %v347, %v406
          %vm438 = vcmp.eq.s32.totalorder %v348, %v406
          %v439 = vadd.s32 %v382, 1
          %v440 = vlaneseq
          %v441 = vshrl.u32 %v440, 7
          %v442 = vsub.s32 0, %v441
          %v443 = vrot.slane %v439, %v442
          %vm444 = vcmp.eq.s32.totalorder %v317, %v443
          %vm445 = vcmp.eq.s32.totalorder %v318, %v443
          %vm446 = vcmp.eq.s32.totalorder %v319, %v443
          %vm447 = vcmp.eq.s32.totalorder %v320, %v443
          %vm448 = vcmp.eq.s32.totalorder %v321, %v443
          %vm449 = vcmp.eq.s32.totalorder %v322, %v443
          %vm450 = vcmp.eq.s32.totalorder %v323, %v443
          %vm451 = vcmp.eq.s32.totalorder %v324, %v443
          %vm452 = vcmp.eq.s32.totalorder %v325, %v443
          %vm453 = vcmp.eq.s32.totalorder %v326, %v443
          %vm454 = vcmp.eq.s32.totalorder %v327, %v443
          %vm455 = vcmp.eq.s32.totalorder %v328, %v443
          %vm456 = vcmp.eq.s32.totalorder %v329, %v443
          %vm457 = vcmp.eq.s32.totalorder %v330, %v443
          %vm458 = vcmp.eq.s32.totalorder %v331, %v443
          %vm459 = vcmp.eq.s32.totalorder %v332, %v443
          %vm460 = vcmp.eq.s32.totalorder %v333, %v443
          %vm461 = vcmp.eq.s32.totalorder %v334, %v443
          %vm462 = vcmp.eq.s32.totalorder %v335, %v443
          %vm463 = vcmp.eq.s32.totalorder %v336, %v443
          %vm464 = vcmp.eq.s32.totalorder %v337, %v443
          %vm465 = vcmp.eq.s32.totalorder %v338, %v443
          %vm466 = vcmp.eq.s32.totalorder %v339, %v443
          %vm467 = vcmp.eq.s32.totalorder %v340, %v443
          %vm468 = vcmp.eq.s32.totalorder %v341, %v443
          %vm469 = vcmp.eq.s32.totalorder %v342, %v443
          %vm470 = vcmp.eq.s32.totalorder %v343, %v443
          %vm471 = vcmp.eq.s32.totalorder %v344, %v443
          %vm472 = vcmp.eq.s32.totalorder %v345, %v443
          %vm473 = vcmp.eq.s32.totalorder %v346, %v443
          %vm474 = vcmp.eq.s32.totalorder %v347, %v443
          %vm475 = vcmp.eq.s32.totalorder %v348, %v443
          %v476 = vlaneseq
          %v477 = vshrl.u32 %v476, 7
          %v478 = vsub.s32 0, %v477
          %v479 = vrot.slane %v381, %v478
          %v480 = vsel %vm444, %v479, 0.0
          %v481 = vsel %vm445, %v479, 0.0
          %v482 = vsel %vm446, %v479, 0.0
          %v483 = vsel %vm447, %v479, 0.0
          %v484 = vsel %vm448, %v479, 0.0
          %v485 = vsel %vm449, %v479, 0.0
          %v486 = vsel %vm450, %v479, 0.0
          %v487 = vsel %vm451, %v479, 0.0
          %v488 = vsel %vm452, %v479, 0.0
          %v489 = vsel %vm453, %v479, 0.0
          %v490 = vsel %vm454, %v479, 0.0
          %v491 = vsel %vm455, %v479, 0.0
          %v492 = vsel %vm456, %v479, 0.0
          %v493 = vsel %vm457, %v479, 0.0
          %v494 = vsel %vm458, %v479, 0.0
          %v495 = vsel %vm459, %v479, 0.0
          %v496 = vsel %vm460, %v479, 0.0
          %v497 = vsel %vm461, %v479, 0.0
          %v498 = vsel %vm462, %v479, 0.0
          %v499 = vsel %vm463, %v479, 0.0
          %v500 = vsel %vm464, %v479, 0.0
          %v501 = vsel %vm465, %v479, 0.0
          %v502 = vsel %vm466, %v479, 0.0
          %v503 = vsel %vm467, %v479, 0.0
          %v504 = vsel %vm468, %v479, 0.0
          %v505 = vsel %vm469, %v479, 0.0
          %v506 = vsel %vm470, %v479, 0.0
          %v507 = vsel %vm471, %v479, 0.0
          %v508 = vsel %vm472, %v479, 0.0
          %v509 = vsel %vm473, %v479, 0.0
          %v510 = vsel %vm474, %v479, 0.0
          %v511 = vsel %vm475, %v479, 0.0
          %v512 = vlaneseq
          %v513 = vshrl.u32 %v512, 7
          %v514 = vsub.s32 0, %v513
          %v515 = vrot.slane %v379, %v514
          %v516 = vsel %vm407, %v515, %v480
          %v517 = vsel %vm408, %v515, %v481
          %v518 = vsel %vm409, %v515, %v482
          %v519 = vsel %vm410, %v515, %v483
          %v520 = vsel %vm411, %v515, %v484
          %v521 = vsel %vm412, %v515, %v485
          %v522 = vsel %vm413, %v515, %v486
          %v523 = vsel %vm414, %v515, %v487
          %v524 = vsel %vm415, %v515, %v488
          %v525 = vsel %vm416, %v515, %v489
          %v526 = vsel %vm417, %v515, %v490
          %v527 = vsel %vm418, %v515, %v491
          %v528 = vsel %vm419, %v515, %v492
          %v529 = vsel %vm420, %v515, %v493
          %v530 = vsel %vm421, %v515, %v494
          %v531 = vsel %vm422, %v515, %v495
          %v532 = vsel %vm423, %v515, %v496
          %v533 = vsel %vm424, %v515, %v497
          %v534 = vsel %vm425, %v515, %v498
          %v535 = vsel %vm426, %v515, %v499
          %v536 = vsel %vm427, %v515, %v500
          %v537 = vsel %vm428, %v515, %v501
          %v538 = vsel %vm429, %v515, %v502
          %v539 = vsel %vm430, %v515, %v503
          %v540 = vsel %vm431, %v515, %v504
          %v541 = vsel %vm432, %v515, %v505
          %v542 = vsel %vm433, %v515, %v506
          %v543 = vsel %vm434, %v515, %v507
          %v544 = vsel %vm435, %v515, %v508
          %v545 = vsel %vm436, %v515, %v509
          %v546 = vsel %vm437, %v515, %v510
          %v547 = vsel %vm438, %v515, %v511
          %548 = vmatprep.subr.mxu0 0.0
          %549 = vmatpush1.msra.mxu0 %v531
          %550 = vmatprep.subr.mxu0 0.0
          %551 = vmatpush1.msra.mxu0 %v530
          %552 = vmatprep.subr.mxu0 0.0
          %553 = vmatpush1.msra.mxu0 %v529
          %554 = vmatprep.subr.mxu0 0.0
          %555 = vmatpush1.msra.mxu0 %v528
          %556 = vmatprep.subr.mxu0 0.0
          %557 = vmatpush1.msra.mxu0 %v527
          %558 = vmatprep.subr.mxu0 0.0
          %559 = vmatpush1.msra.mxu0 %v526
          %560 = vmatprep.subr.mxu0 0.0
          %561 = vmatpush1.msra.mxu0 %v525
          %562 = vmatprep.subr.mxu0 0.0
          %563 = vmatpush1.msra.mxu0 %v524
          %564 = vmatprep.subr.mxu0 0.0
          %565 = vmatpush1.msra.mxu0 %v523
          %566 = vmatprep.subr.mxu0 0.0
          %567 = vmatpush1.msra.mxu0 %v522
          %568 = vmatprep.subr.mxu0 0.0
          %569 = vmatpush1.msra.mxu0 %v521
          %570 = vmatprep.subr.mxu0 0.0
          %571 = vmatpush1.msra.mxu0 %v520
          %572 = vmatprep.subr.mxu0 0.0
          %573 = vmatpush1.msra.mxu0 %v519
          %574 = vmatprep.subr.mxu0 0.0
          %575 = vmatpush1.msra.mxu0 %v518
          %576 = vmatprep.subr.mxu0 0.0
          %577 = vmatpush1.msra.mxu0 %v517
          %578 = vmatprep.subr.mxu0 0.0
          %579 = vmatpush1.msra.mxu0 %v516
          %580 = vmatprep.subr.mxu0 0.0
          %581 = vmatpush2.msra.mxu0 %v547
          %582 = vmatprep.subr.mxu0 0.0
          %583 = vmatpush2.msra.mxu0 %v546
          %584 = vmatprep.subr.mxu0 0.0
          %585 = vmatpush2.msra.mxu0 %v545
          %586 = vmatprep.subr.mxu0 0.0
          %587 = vmatpush2.msra.mxu0 %v544
          %588 = vmatprep.subr.mxu0 0.0
          %589 = vmatpush2.msra.mxu0 %v543
          %590 = vmatprep.subr.mxu0 0.0
          %591 = vmatpush2.msra.mxu0 %v542
          %592 = vmatprep.subr.mxu0 0.0
          %593 = vmatpush2.msra.mxu0 %v541
          %594 = vmatprep.subr.mxu0 0.0
          %595 = vmatpush2.msra.mxu0 %v540
          %596 = vmatprep.subr.mxu0 0.0
          %597 = vmatpush2.msra.mxu0 %v539
          %598 = vmatprep.subr.mxu0 0.0
          %599 = vmatpush2.msra.mxu0 %v538
          %600 = vmatprep.subr.mxu0 0.0
          %601 = vmatpush2.msra.mxu0 %v537
          %602 = vmatprep.subr.mxu0 0.0
          %603 = vmatpush2.msra.mxu0 %v536
          %604 = vmatprep.subr.mxu0 0.0
          %605 = vmatpush2.msra.mxu0 %v535
          %606 = vmatprep.subr.mxu0 0.0
          %607 = vmatpush2.msra.mxu0 %v534
          %608 = vmatprep.subr.mxu0 0.0
          %609 = vmatpush2.msra.mxu0 %v533
          %610 = vmatprep.subr.mxu0 0.0
          %611 = vmatpush2.msra.mxu0 %v532
          %612 = vmatprep.mubr.f32.mxu0 %v400
          %613 = vmatmul.mubr.f32.gmra.mxu0 %v396
          %v614 = vpop.f32.mrf.mxu0
          %v615 = vadd.f32 0.0, %v614
          %v616 = vpop.f32.mrf.mxu0
          %617 = vdwg.mxu0
          %v618 = vld [vmem:[%s313] sm:$0x1]
          %v619 = vadd.f32 %v618, %v615
          %620 = vst [vmem:[%s313] sm:$0x1] %v619
          %v621 = vlaneseq
          %v622 = vshrl.u32 %v621, 7
          %v623 = vsub.s32 1, %v622
          %v624 = vrot.slane %v382, %v623
          %vm625 = vcmp.eq.s32.totalorder %v317, %v624
          %vm626 = vcmp.eq.s32.totalorder %v318, %v624
          %vm627 = vcmp.eq.s32.totalorder %v319, %v624
          %vm628 = vcmp.eq.s32.totalorder %v320, %v624
          %vm629 = vcmp.eq.s32.totalorder %v321, %v624
          %vm630 = vcmp.eq.s32.totalorder %v322, %v624
          %vm631 = vcmp.eq.s32.totalorder %v323, %v624
          %vm632 = vcmp.eq.s32.totalorder %v324, %v624
          %vm633 = vcmp.eq.s32.totalorder %v325, %v624
          %vm634 = vcmp.eq.s32.totalorder %v326, %v624
          %vm635 = vcmp.eq.s32.totalorder %v327, %v624
          %vm636 = vcmp.eq.s32.totalorder %v328, %v624
          %vm637 = vcmp.eq.s32.totalorder %v329, %v624
          %vm638 = vcmp.eq.s32.totalorder %v330, %v624
          %vm639 = vcmp.eq.s32.totalorder %v331, %v624
          %vm640 = vcmp.eq.s32.totalorder %v332, %v624
          %vm641 = vcmp.eq.s32.totalorder %v333, %v624
          %vm642 = vcmp.eq.s32.totalorder %v334, %v624
          %vm643 = vcmp.eq.s32.totalorder %v335, %v624
          %vm644 = vcmp.eq.s32.totalorder %v336, %v624
          %vm645 = vcmp.eq.s32.totalorder %v337, %v624
          %vm646 = vcmp.eq.s32.totalorder %v338, %v624
          %vm647 = vcmp.eq.s32.totalorder %v339, %v624
          %vm648 = vcmp.eq.s32.totalorder %v340, %v624
          %vm649 = vcmp.eq.s32.totalorder %v341, %v624
          %vm650 = vcmp.eq.s32.totalorder %v342, %v624
          %vm651 = vcmp.eq.s32.totalorder %v343, %v624
          %vm652 = vcmp.eq.s32.totalorder %v344, %v624
          %vm653 = vcmp.eq.s32.totalorder %v345, %v624
          %vm654 = vcmp.eq.s32.totalorder %v346, %v624
          %vm655 = vcmp.eq.s32.totalorder %v347, %v624
          %vm656 = vcmp.eq.s32.totalorder %v348, %v624
          %v657 = vlaneseq
          %v658 = vshrl.u32 %v657, 7
          %v659 = vsub.s32 1, %v658
          %v660 = vrot.slane %v439, %v659
          %vm661 = vcmp.eq.s32.totalorder %v317, %v660
          %vm662 = vcmp.eq.s32.totalorder %v318, %v660
          %vm663 = vcmp.eq.s32.totalorder %v319, %v660
          %vm664 = vcmp.eq.s32.totalorder %v320, %v660
          %vm665 = vcmp.eq.s32.totalorder %v321, %v660
          %vm666 = vcmp.eq.s32.totalorder %v322, %v660
          %vm667 = vcmp.eq.s32.totalorder %v323, %v660
          %vm668 = vcmp.eq.s32.totalorder %v324, %v660
          %vm669 = vcmp.eq.s32.totalorder %v325, %v660
          %vm670 = vcmp.eq.s32.totalorder %v326, %v660
          %vm671 = vcmp.eq.s32.totalorder %v327, %v660
          %vm672 = vcmp.eq.s32.totalorder %v328, %v660
          %vm673 = vcmp.eq.s32.totalorder %v329, %v660
          %vm674 = vcmp.eq.s32.totalorder %v330, %v660
          %vm675 = vcmp.eq.s32.totalorder %v331, %v660
          %vm676 = vcmp.eq.s32.totalorder %v332, %v660
          %vm677 = vcmp.eq.s32.totalorder %v333, %v660
          %vm678 = vcmp.eq.s32.totalorder %v334, %v660
          %vm679 = vcmp.eq.s32.totalorder %v335, %v660
          %vm680 = vcmp.eq.s32.totalorder %v336, %v660
          %vm681 = vcmp.eq.s32.totalorder %v337, %v660
          %vm682 = vcmp.eq.s32.totalorder %v338, %v660
          %vm683 = vcmp.eq.s32.totalorder %v339, %v660
          %vm684 = vcmp.eq.s32.totalorder %v340, %v660
          %vm685 = vcmp.eq.s32.totalorder %v341, %v660
          %vm686 = vcmp.eq.s32.totalorder %v342, %v660
          %vm687 = vcmp.eq.s32.totalorder %v343, %v660
          %vm688 = vcmp.eq.s32.totalorder %v344, %v660
          %vm689 = vcmp.eq.s32.totalorder %v345, %v660
          %vm690 = vcmp.eq.s32.totalorder %v346, %v660
          %vm691 = vcmp.eq.s32.totalorder %v347, %v660
          %vm692 = vcmp.eq.s32.totalorder %v348, %v660
          %v693 = vlaneseq
          %v694 = vshrl.u32 %v693, 7
          %v695 = vsub.s32 1, %v694
          %v696 = vrot.slane %v381, %v695
          %v697 = vsel %vm661, %v696, 0.0
          %v698 = vsel %vm662, %v696, 0.0
          %v699 = vsel %vm663, %v696, 0.0
          %v700 = vsel %vm664, %v696, 0.0
          %v701 = vsel %vm665, %v696, 0.0
          %v702 = vsel %vm666, %v696, 0.0
          %v703 = vsel %vm667, %v696, 0.0
          %v704 = vsel %vm668, %v696, 0.0
          %v705 = vsel %vm669, %v696, 0.0
          %v706 = vsel %vm670, %v696, 0.0
          %v707 = vsel %vm671, %v696, 0.0
          %v708 = vsel %vm672, %v696, 0.0
          %v709 = vsel %vm673, %v696, 0.0
          %v710 = vsel %vm674, %v696, 0.0
          %v711 = vsel %vm675, %v696, 0.0
          %v712 = vsel %vm676, %v696, 0.0
          %v713 = vsel %vm677, %v696, 0.0
          %v714 = vsel %vm678, %v696, 0.0
          %v715 = vsel %vm679, %v696, 0.0
          %v716 = vsel %vm680, %v696, 0.0
          %v717 = vsel %vm681, %v696, 0.0
          %v718 = vsel %vm682, %v696, 0.0
          %v719 = vsel %vm683, %v696, 0.0
          %v720 = vsel %vm684, %v696, 0.0
          %v721 = vsel %vm685, %v696, 0.0
          %v722 = vsel %vm686, %v696, 0.0
          %v723 = vsel %vm687, %v696, 0.0
          %v724 = vsel %vm688, %v696, 0.0
          %v725 = vsel %vm689, %v696, 0.0
          %v726 = vsel %vm690, %v696, 0.0
          %v727 = vsel %vm691, %v696, 0.0
          %v728 = vsel %vm692, %v696, 0.0
          %v729 = vlaneseq
          %v730 = vshrl.u32 %v729, 7
          %v731 = vsub.s32 1, %v730
          %v732 = vrot.slane %v379, %v731
          %v733 = vsel %vm625, %v732, %v697
          %v734 = vsel %vm626, %v732, %v698
          %v735 = vsel %vm627, %v732, %v699
          %v736 = vsel %vm628, %v732, %v700
          %v737 = vsel %vm629, %v732, %v701
          %v738 = vsel %vm630, %v732, %v702
          %v739 = vsel %vm631, %v732, %v703
          %v740 = vsel %vm632, %v732, %v704
          %v741 = vsel %vm633, %v732, %v705
          %v742 = vsel %vm634, %v732, %v706
          %v743 = vsel %vm635, %v732, %v707
          %v744 = vsel %vm636, %v732, %v708
          %v745 = vsel %vm637, %v732, %v709
          %v746 = vsel %vm638, %v732, %v710
          %v747 = vsel %vm639, %v732, %v711
          %v748 = vsel %vm640, %v732, %v712
          %v749 = vsel %vm641, %v732, %v713
          %v750 = vsel %vm642, %v732, %v714
          %v751 = vsel %vm643, %v732, %v715
          %v752 = vsel %vm644, %v732, %v716
          %v753 = vsel %vm645, %v732, %v717
          %v754 = vsel %vm646, %v732, %v718
          %v755 = vsel %vm647, %v732, %v719
          %v756 = vsel %vm648, %v732, %v720
          %v757 = vsel %vm649, %v732, %v721
          %v758 = vsel %vm650, %v732, %v722
          %v759 = vsel %vm651, %v732, %v723
          %v760 = vsel %vm652, %v732, %v724
          %v761 = vsel %vm653, %v732, %v725
          %v762 = vsel %vm654, %v732, %v726
          %v763 = vsel %vm655, %v732, %v727
          %v764 = vsel %vm656, %v732, %v728
          %765 = vmatprep.subr.mxu0 0.0
          %766 = vmatpush1.msra.mxu0 %v748
          %767 = vmatprep.subr.mxu0 0.0
          %768 = vmatpush1.msra.mxu0 %v747
          %769 = vmatprep.subr.mxu0 0.0
          %770 = vmatpush1.msra.mxu0 %v746
          %771 = vmatprep.subr.mxu0 0.0
          %772 = vmatpush1.msra.mxu0 %v745
          %773 = vmatprep.subr.mxu0 0.0
          %774 = vmatpush1.msra.mxu0 %v744
          %775 = vmatprep.subr.mxu0 0.0
          %776 = vmatpush1.msra.mxu0 %v743
          %777 = vmatprep.subr.mxu0 0.0
          %778 = vmatpush1.msra.mxu0 %v742
          %779 = vmatprep.subr.mxu0 0.0
          %780 = vmatpush1.msra.mxu0 %v741
          %781 = vmatprep.subr.mxu0 0.0
          %782 = vmatpush1.msra.mxu0 %v740
          %783 = vmatprep.subr.mxu0 0.0
          %784 = vmatpush1.msra.mxu0 %v739
          %785 = vmatprep.subr.mxu0 0.0
          %786 = vmatpush1.msra.mxu0 %v738
          %787 = vmatprep.subr.mxu0 0.0
          %788 = vmatpush1.msra.mxu0 %v737
          %789 = vmatprep.subr.mxu0 0.0
          %790 = vmatpush1.msra.mxu0 %v736
          %791 = vmatprep.subr.mxu0 0.0
          %792 = vmatpush1.msra.mxu0 %v735
          %793 = vmatprep.subr.mxu0 0.0
          %794 = vmatpush1.msra.mxu0 %v734
          %795 = vmatprep.subr.mxu0 0.0
          %796 = vmatpush1.msra.mxu0 %v733
          %797 = vmatprep.subr.mxu0 0.0
          %798 = vmatpush2.msra.mxu0 %v764
          %799 = vmatprep.subr.mxu0 0.0
          %800 = vmatpush2.msra.mxu0 %v763
          %801 = vmatprep.subr.mxu0 0.0
          %802 = vmatpush2.msra.mxu0 %v762
          %803 = vmatprep.subr.mxu0 0.0
          %804 = vmatpush2.msra.mxu0 %v761
          %805 = vmatprep.subr.mxu0 0.0
          %806 = vmatpush2.msra.mxu0 %v760
          %807 = vmatprep.subr.mxu0 0.0
          %808 = vmatpush2.msra.mxu0 %v759
          %809 = vmatprep.subr.mxu0 0.0
          %810 = vmatpush2.msra.mxu0 %v758
          %811 = vmatprep.subr.mxu0 0.0
          %812 = vmatpush2.msra.mxu0 %v757
          %813 = vmatprep.subr.mxu0 0.0
          %814 = vmatpush2.msra.mxu0 %v756
          %815 = vmatprep.subr.mxu0 0.0
          %816 = vmatpush2.msra.mxu0 %v755
          %817 = vmatprep.subr.mxu0 0.0
          %818 = vmatpush2.msra.mxu0 %v754
          %819 = vmatprep.subr.mxu0 0.0
          %820 = vmatpush2.msra.mxu0 %v753
          %821 = vmatprep.subr.mxu0 0.0
          %822 = vmatpush2.msra.mxu0 %v752
          %823 = vmatprep.subr.mxu0 0.0
          %824 = vmatpush2.msra.mxu0 %v751
          %825 = vmatprep.subr.mxu0 0.0
          %826 = vmatpush2.msra.mxu0 %v750
          %827 = vmatprep.subr.mxu0 0.0
          %828 = vmatpush2.msra.mxu0 %v749
          %829 = vmatprep.mubr.f32.mxu0 %v400
          %830 = vmatmul.mubr.f32.gmra.mxu0 %v396
          %v831 = vpop.f32.mrf.mxu0
          %v832 = vadd.f32 0.0, %v831
          %v833 = vpop.f32.mrf.mxu0
          %834 = vdwg.mxu0
          %v835 = vld [vmem:[%s313 + $0x1] sm:$0x1]
          %v836 = vadd.f32 %v835, %v832
          %837 = vst [vmem:[%s313 + $0x1] sm:$0x1] %v836
          %v838 = vlaneseq
          %v839 = vshrl.u32 %v838, 7
          %v840 = vsub.s32 2, %v839
          %v841 = vrot.slane %v382, %v840
          %vm842 = vcmp.eq.s32.totalorder %v317, %v841
          %vm843 = vcmp.eq.s32.totalorder %v318, %v841
          %vm844 = vcmp.eq.s32.totalorder %v319, %v841
          %vm845 = vcmp.eq.s32.totalorder %v320, %v841
          %vm846 = vcmp.eq.s32.totalorder %v321, %v841
          %vm847 = vcmp.eq.s32.totalorder %v322, %v841
          %vm848 = vcmp.eq.s32.totalorder %v323, %v841
          %vm849 = vcmp.eq.s32.totalorder %v324, %v841
          %vm850 = vcmp.eq.s32.totalorder %v325, %v841
          %vm851 = vcmp.eq.s32.totalorder %v326, %v841
          %vm852 = vcmp.eq.s32.totalorder %v327, %v841
          %vm853 = vcmp.eq.s32.totalorder %v328, %v841
          %vm854 = vcmp.eq.s32.totalorder %v329, %v841
          %vm855 = vcmp.eq.s32.totalorder %v330, %v841
          %vm856 = vcmp.eq.s32.totalorder %v331, %v841
          %vm857 = vcmp.eq.s32.totalorder %v332, %v841
          %vm858 = vcmp.eq.s32.totalorder %v333, %v841
          %vm859 = vcmp.eq.s32.totalorder %v334, %v841
          %vm860 = vcmp.eq.s32.totalorder %v335, %v841
          %vm861 = vcmp.eq.s32.totalorder %v336, %v841
          %vm862 = vcmp.eq.s32.totalorder %v337, %v841
          %vm863 = vcmp.eq.s32.totalorder %v338, %v841
          %vm864 = vcmp.eq.s32.totalorder %v339, %v841
          %vm865 = vcmp.eq.s32.totalorder %v340, %v841
          %vm866 = vcmp.eq.s32.totalorder %v341, %v841
          %vm867 = vcmp.eq.s32.totalorder %v342, %v841
          %vm868 = vcmp.eq.s32.totalorder %v343, %v841
          %vm869 = vcmp.eq.s32.totalorder %v344, %v841
          %vm870 = vcmp.eq.s32.totalorder %v345, %v841
          %vm871 = vcmp.eq.s32.totalorder %v346, %v841
          %vm872 = vcmp.eq.s32.totalorder %v347, %v841
          %vm873 = vcmp.eq.s32.totalorder %v348, %v841
          %v874 = vlaneseq
          %v875 = vshrl.u32 %v874, 7
          %v876 = vsub.s32 2, %v875
          %v877 = vrot.slane %v439, %v876
          %vm878 = vcmp.eq.s32.totalorder %v317, %v877
          %vm879 = vcmp.eq.s32.totalorder %v318, %v877
          %vm880 = vcmp.eq.s32.totalorder %v319, %v877
          %vm881 = vcmp.eq.s32.totalorder %v320, %v877
          %vm882 = vcmp.eq.s32.totalorder %v321, %v877
          %vm883 = vcmp.eq.s32.totalorder %v322, %v877
          %vm884 = vcmp.eq.s32.totalorder %v323, %v877
          %vm885 = vcmp.eq.s32.totalorder %v324, %v877
          %vm886 = vcmp.eq.s32.totalorder %v325, %v877
          %vm887 = vcmp.eq.s32.totalorder %v326, %v877
          %vm888 = vcmp.eq.s32.totalorder %v327, %v877
          %vm889 = vcmp.eq.s32.totalorder %v328, %v877
          %vm890 = vcmp.eq.s32.totalorder %v329, %v877
          %vm891 = vcmp.eq.s32.totalorder %v330, %v877
          %vm892 = vcmp.eq.s32.totalorder %v331, %v877
          %vm893 = vcmp.eq.s32.totalorder %v332, %v877
          %vm894 = vcmp.eq.s32.totalorder %v333, %v877
          %vm895 = vcmp.eq.s32.totalorder %v334, %v877
          %vm896 = vcmp.eq.s32.totalorder %v335, %v877
          %vm897 = vcmp.eq.s32.totalorder %v336, %v877
          %vm898 = vcmp.eq.s32.totalorder %v337, %v877
          %vm899 = vcmp.eq.s32.totalorder %v338, %v877
          %vm900 = vcmp.eq.s32.totalorder %v339, %v877
          %vm901 = vcmp.eq.s32.totalorder %v340, %v877
          %vm902 = vcmp.eq.s32.totalorder %v341, %v877
          %vm903 = vcmp.eq.s32.totalorder %v342, %v877
          %vm904 = vcmp.eq.s32.totalorder %v343, %v877
          %vm905 = vcmp.eq.s32.totalorder %v344, %v877
          %vm906 = vcmp.eq.s32.totalorder %v345, %v877
          %vm907 = vcmp.eq.s32.totalorder %v346, %v877
          %vm908 = vcmp.eq.s32.totalorder %v347, %v877
          %vm909 = vcmp.eq.s32.totalorder %v348, %v877
          %v910 = vlaneseq
          %v911 = vshrl.u32 %v910, 7
          %v912 = vsub.s32 2, %v911
          %v913 = vrot.slane %v381, %v912
          %v914 = vsel %vm878, %v913, 0.0
          %v915 = vsel %vm879, %v913, 0.0
          %v916 = vsel %vm880, %v913, 0.0
          %v917 = vsel %vm881, %v913, 0.0
          %v918 = vsel %vm882, %v913, 0.0
          %v919 = vsel %vm883, %v913, 0.0
          %v920 = vsel %vm884, %v913, 0.0
          %v921 = vsel %vm885, %v913, 0.0
          %v922 = vsel %vm886, %v913, 0.0
          %v923 = vsel %vm887, %v913, 0.0
          %v924 = vsel %vm888, %v913, 0.0
          %v925 = vsel %vm889, %v913, 0.0
          %v926 = vsel %vm890, %v913, 0.0
          %v927 = vsel %vm891, %v913, 0.0
          %v928 = vsel %vm892, %v913, 0.0
          %v929 = vsel %vm893, %v913, 0.0
          %v930 = vsel %vm894, %v913, 0.0
          %v931 = vsel %vm895, %v913, 0.0
          %v932 = vsel %vm896, %v913, 0.0
          %v933 = vsel %vm897, %v913, 0.0
          %v934 = vsel %vm898, %v913, 0.0
          %v935 = vsel %vm899, %v913, 0.0
          %v936 = vsel %vm900, %v913, 0.0
          %v937 = vsel %vm901, %v913, 0.0
          %v938 = vsel %vm902, %v913, 0.0
          %v939 = vsel %vm903, %v913, 0.0
          %v940 = vsel %vm904, %v913, 0.0
          %v941 = vsel %vm905, %v913, 0.0
          %v942 = vsel %vm906, %v913, 0.0
          %v943 = vsel %vm907, %v913, 0.0
          %v944 = vsel %vm908, %v913, 0.0
          %v945 = vsel %vm909, %v913, 0.0
          %v946 = vlaneseq
          %v947 = vshrl.u32 %v946, 7
          %v948 = vsub.s32 2, %v947
          %v949 = vrot.slane %v379, %v948
          %v950 = vsel %vm842, %v949, %v914
          %v951 = vsel %vm843, %v949, %v915
          %v952 = vsel %vm844, %v949, %v916
          %v953 = vsel %vm845, %v949, %v917
          %v954 = vsel %vm846, %v949, %v918
          %v955 = vsel %vm847, %v949, %v919
          %v956 = vsel %vm848, %v949, %v920
          %v957 = vsel %vm849, %v949, %v921
          %v958 = vsel %vm850, %v949, %v922
          %v959 = vsel %vm851, %v949, %v923
          %v960 = vsel %vm852, %v949, %v924
          %v961 = vsel %vm853, %v949, %v925
          %v962 = vsel %vm854, %v949, %v926
          %v963 = vsel %vm855, %v949, %v927
          %v964 = vsel %vm856, %v949, %v928
          %v965 = vsel %vm857, %v949, %v929
          %v966 = vsel %vm858, %v949, %v930
          %v967 = vsel %vm859, %v949, %v931
          %v968 = vsel %vm860, %v949, %v932
          %v969 = vsel %vm861, %v949, %v933
          %v970 = vsel %vm862, %v949, %v934
          %v971 = vsel %vm863, %v949, %v935
          %v972 = vsel %vm864, %v949, %v936
          %v973 = vsel %vm865, %v949, %v937
          %v974 = vsel %vm866, %v949, %v938
          %v975 = vsel %vm867, %v949, %v939
          %v976 = vsel %vm868, %v949, %v940
          %v977 = vsel %vm869, %v949, %v941
          %v978 = vsel %vm870, %v949, %v942
          %v979 = vsel %vm871, %v949, %v943
          %v980 = vsel %vm872, %v949, %v944
          %v981 = vsel %vm873, %v949, %v945
          %982 = vmatprep.subr.mxu0 0.0
          %983 = vmatpush1.msra.mxu0 %v965
          %984 = vmatprep.subr.mxu0 0.0
          %985 = vmatpush1.msra.mxu0 %v964
          %986 = vmatprep.subr.mxu0 0.0
          %987 = vmatpush1.msra.mxu0 %v963
          %988 = vmatprep.subr.mxu0 0.0
          %989 = vmatpush1.msra.mxu0 %v962
          %990 = vmatprep.subr.mxu0 0.0
          %991 = vmatpush1.msra.mxu0 %v961
          %992 = vmatprep.subr.mxu0 0.0
          %993 = vmatpush1.msra.mxu0 %v960
          %994 = vmatprep.subr.mxu0 0.0
          %995 = vmatpush1.msra.mxu0 %v959
          %996 = vmatprep.subr.mxu0 0.0
          %997 = vmatpush1.msra.mxu0 %v958
          %998 = vmatprep.subr.mxu0 0.0
          %999 = vmatpush1.msra.mxu0 %v957
          %1000 = vmatprep.subr.mxu0 0.0
          %1001 = vmatpush1.msra.mxu0 %v956
          %1002 = vmatprep.subr.mxu0 0.0
          %1003 = vmatpush1.msra.mxu0 %v955
          %1004 = vmatprep.subr.mxu0 0.0
          %1005 = vmatpush1.msra.mxu0 %v954
          %1006 = vmatprep.subr.mxu0 0.0
          %1007 = vmatpush1.msra.mxu0 %v953
          %1008 = vmatprep.subr.mxu0 0.0
          %1009 = vmatpush1.msra.mxu0 %v952
          %1010 = vmatprep.subr.mxu0 0.0
          %1011 = vmatpush1.msra.mxu0 %v951
          %1012 = vmatprep.subr.mxu0 0.0
          %1013 = vmatpush1.msra.mxu0 %v950
          %1014 = vmatprep.subr.mxu0 0.0
          %1015 = vmatpush2.msra.mxu0 %v981
          %1016 = vmatprep.subr.mxu0 0.0
          %1017 = vmatpush2.msra.mxu0 %v980
          %1018 = vmatprep.subr.mxu0 0.0
          %1019 = vmatpush2.msra.mxu0 %v979
          %1020 = vmatprep.subr.mxu0 0.0
          %1021 = vmatpush2.msra.mxu0 %v978
          %1022 = vmatprep.subr.mxu0 0.0
          %1023 = vmatpush2.msra.mxu0 %v977
          %1024 = vmatprep.subr.mxu0 0.0
          %1025 = vmatpush2.msra.mxu0 %v976
          %1026 = vmatprep.subr.mxu0 0.0
          %1027 = vmatpush2.msra.mxu0 %v975
          %1028 = vmatprep.subr.mxu0 0.0
          %1029 = vmatpush2.msra.mxu0 %v974
          %1030 = vmatprep.subr.mxu0 0.0
          %1031 = vmatpush2.msra.mxu0 %v973
          %1032 = vmatprep.subr.mxu0 0.0
          %1033 = vmatpush2.msra.mxu0 %v972
          %1034 = vmatprep.subr.mxu0 0.0
          %1035 = vmatpush2.msra.mxu0 %v971
          %1036 = vmatprep.subr.mxu0 0.0
          %1037 = vmatpush2.msra.mxu0 %v970
          %1038 = vmatprep.subr.mxu0 0.0
          %1039 = vmatpush2.msra.mxu0 %v969
          %1040 = vmatprep.subr.mxu0 0.0
          %1041 = vmatpush2.msra.mxu0 %v968
          %1042 = vmatprep.subr.mxu0 0.0
          %1043 = vmatpush2.msra.mxu0 %v967
          %1044 = vmatprep.subr.mxu0 0.0
          %1045 = vmatpush2.msra.mxu0 %v966
          %1046 = vmatprep.mubr.f32.mxu0 %v400
          %1047 = vmatmul.mubr.f32.gmra.mxu0 %v396
          %v1048 = vpop.f32.mrf.mxu0
          %v1049 = vadd.f32 0.0, %v1048
          %v1050 = vpop.f32.mrf.mxu0
          %1051 = vdwg.mxu0
          %v1052 = vld [vmem:[%s313 + $0x2] sm:$0x1]
          %v1053 = vadd.f32 %v1052, %v1049
          %1054 = vst [vmem:[%s313 + $0x2] sm:$0x1] %v1053
          %v1055 = vlaneseq
          %v1056 = vshrl.u32 %v1055, 7
          %v1057 = vsub.s32 3, %v1056
          %v1058 = vrot.slane %v382, %v1057
          %vm1059 = vcmp.eq.s32.totalorder %v317, %v1058
          %vm1060 = vcmp.eq.s32.totalorder %v318, %v1058
          %vm1061 = vcmp.eq.s32.totalorder %v319, %v1058
          %vm1062 = vcmp.eq.s32.totalorder %v320, %v1058
          %vm1063 = vcmp.eq.s32.totalorder %v321, %v1058
          %vm1064 = vcmp.eq.s32.totalorder %v322, %v1058
          %vm1065 = vcmp.eq.s32.totalorder %v323, %v1058
          %vm1066 = vcmp.eq.s32.totalorder %v324, %v1058
          %vm1067 = vcmp.eq.s32.totalorder %v325, %v1058
          %vm1068 = vcmp.eq.s32.totalorder %v326, %v1058
          %vm1069 = vcmp.eq.s32.totalorder %v327, %v1058
          %vm1070 = vcmp.eq.s32.totalorder %v328, %v1058
          %vm1071 = vcmp.eq.s32.totalorder %v329, %v1058
          %vm1072 = vcmp.eq.s32.totalorder %v330, %v1058
          %vm1073 = vcmp.eq.s32.totalorder %v331, %v1058
          %vm1074 = vcmp.eq.s32.totalorder %v332, %v1058
          %vm1075 = vcmp.eq.s32.totalorder %v333, %v1058
          %vm1076 = vcmp.eq.s32.totalorder %v334, %v1058
          %vm1077 = vcmp.eq.s32.totalorder %v335, %v1058
          %vm1078 = vcmp.eq.s32.totalorder %v336, %v1058
          %vm1079 = vcmp.eq.s32.totalorder %v337, %v1058
          %vm1080 = vcmp.eq.s32.totalorder %v338, %v1058
          %vm1081 = vcmp.eq.s32.totalorder %v339, %v1058
          %vm1082 = vcmp.eq.s32.totalorder %v340, %v1058
          %vm1083 = vcmp.eq.s32.totalorder %v341, %v1058
          %vm1084 = vcmp.eq.s32.totalorder %v342, %v1058
          %vm1085 = vcmp.eq.s32.totalorder %v343, %v1058
          %vm1086 = vcmp.eq.s32.totalorder %v344, %v1058
          %vm1087 = vcmp.eq.s32.totalorder %v345, %v1058
          %vm1088 = vcmp.eq.s32.totalorder %v346, %v1058
          %vm1089 = vcmp.eq.s32.totalorder %v347, %v1058
          %vm1090 = vcmp.eq.s32.totalorder %v348, %v1058
          %v1091 = vlaneseq
          %v1092 = vshrl.u32 %v1091, 7
          %v1093 = vsub.s32 3, %v1092
          %v1094 = vrot.slane %v439, %v1093
          %vm1095 = vcmp.eq.s32.totalorder %v317, %v1094
          %vm1096 = vcmp.eq.s32.totalorder %v318, %v1094
          %vm1097 = vcmp.eq.s32.totalorder %v319, %v1094
          %vm1098 = vcmp.eq.s32.totalorder %v320, %v1094
          %vm1099 = vcmp.eq.s32.totalorder %v321, %v1094
          %vm1100 = vcmp.eq.s32.totalorder %v322, %v1094
          %vm1101 = vcmp.eq.s32.totalorder %v323, %v1094
          %vm1102 = vcmp.eq.s32.totalorder %v324, %v1094
          %vm1103 = vcmp.eq.s32.totalorder %v325, %v1094
          %vm1104 = vcmp.eq.s32.totalorder %v326, %v1094
          %vm1105 = vcmp.eq.s32.totalorder %v327, %v1094
          %vm1106 = vcmp.eq.s32.totalorder %v328, %v1094
          %vm1107 = vcmp.eq.s32.totalorder %v329, %v1094
          %vm1108 = vcmp.eq.s32.totalorder %v330, %v1094
          %vm1109 = vcmp.eq.s32.totalorder %v331, %v1094
          %vm1110 = vcmp.eq.s32.totalorder %v332, %v1094
          %vm1111 = vcmp.eq.s32.totalorder %v333, %v1094
          %vm1112 = vcmp.eq.s32.totalorder %v334, %v1094
          %vm1113 = vcmp.eq.s32.totalorder %v335, %v1094
          %vm1114 = vcmp.eq.s32.totalorder %v336, %v1094
          %vm1115 = vcmp.eq.s32.totalorder %v337, %v1094
          %vm1116 = vcmp.eq.s32.totalorder %v338, %v1094
          %vm1117 = vcmp.eq.s32.totalorder %v339, %v1094
          %vm1118 = vcmp.eq.s32.totalorder %v340, %v1094
          %vm1119 = vcmp.eq.s32.totalorder %v341, %v1094
          %vm1120 = vcmp.eq.s32.totalorder %v342, %v1094
          %vm1121 = vcmp.eq.s32.totalorder %v343, %v1094
          %vm1122 = vcmp.eq.s32.totalorder %v344, %v1094
          %vm1123 = vcmp.eq.s32.totalorder %v345, %v1094
          %vm1124 = vcmp.eq.s32.totalorder %v346, %v1094
          %vm1125 = vcmp.eq.s32.totalorder %v347, %v1094
          %vm1126 = vcmp.eq.s32.totalorder %v348, %v1094
          %v1127 = vlaneseq
          %v1128 = vshrl.u32 %v1127, 7
          %v1129 = vsub.s32 3, %v1128
          %v1130 = vrot.slane %v381, %v1129
          %v1131 = vsel %vm1095, %v1130, 0.0
          %v1132 = vsel %vm1096, %v1130, 0.0
          %v1133 = vsel %vm1097, %v1130, 0.0
          %v1134 = vsel %vm1098, %v1130, 0.0
          %v1135 = vsel %vm1099, %v1130, 0.0
          %v1136 = vsel %vm1100, %v1130, 0.0
          %v1137 = vsel %vm1101, %v1130, 0.0
          %v1138 = vsel %vm1102, %v1130, 0.0
          %v1139 = vsel %vm1103, %v1130, 0.0
          %v1140 = vsel %vm1104, %v1130, 0.0
          %v1141 = vsel %vm1105, %v1130, 0.0
          %v1142 = vsel %vm1106, %v1130, 0.0
          %v1143 = vsel %vm1107, %v1130, 0.0
          %v1144 = vsel %vm1108, %v1130, 0.0
          %v1145 = vsel %vm1109, %v1130, 0.0
          %v1146 = vsel %vm1110, %v1130, 0.0
          %v1147 = vsel %vm1111, %v1130, 0.0
          %v1148 = vsel %vm1112, %v1130, 0.0
          %v1149 = vsel %vm1113, %v1130, 0.0
          %v1150 = vsel %vm1114, %v1130, 0.0
          %v1151 = vsel %vm1115, %v1130, 0.0
          %v1152 = vsel %vm1116, %v1130, 0.0
          %v1153 = vsel %vm1117, %v1130, 0.0
          %v1154 = vsel %vm1118, %v1130, 0.0
          %v1155 = vsel %vm1119, %v1130, 0.0
          %v1156 = vsel %vm1120, %v1130, 0.0
          %v1157 = vsel %vm1121, %v1130, 0.0
          %v1158 = vsel %vm1122, %v1130, 0.0
          %v1159 = vsel %vm1123, %v1130, 0.0
          %v1160 = vsel %vm1124, %v1130, 0.0
          %v1161 = vsel %vm1125, %v1130, 0.0
          %v1162 = vsel %vm1126, %v1130, 0.0
          %v1163 = vlaneseq
          %v1164 = vshrl.u32 %v1163, 7
          %v1165 = vsub.s32 3, %v1164
          %v1166 = vrot.slane %v379, %v1165
          %v1167 = vsel %vm1059, %v1166, %v1131
          %v1168 = vsel %vm1060, %v1166, %v1132
          %v1169 = vsel %vm1061, %v1166, %v1133
          %v1170 = vsel %vm1062, %v1166, %v1134
          %v1171 = vsel %vm1063, %v1166, %v1135
          %v1172 = vsel %vm1064, %v1166, %v1136
          %v1173 = vsel %vm1065, %v1166, %v1137
          %v1174 = vsel %vm1066, %v1166, %v1138
          %v1175 = vsel %vm1067, %v1166, %v1139
          %v1176 = vsel %vm1068, %v1166, %v1140
          %v1177 = vsel %vm1069, %v1166, %v1141
          %v1178 = vsel %vm1070, %v1166, %v1142
          %v1179 = vsel %vm1071, %v1166, %v1143
          %v1180 = vsel %vm1072, %v1166, %v1144
          %v1181 = vsel %vm1073, %v1166, %v1145
          %v1182 = vsel %vm1074, %v1166, %v1146
          %v1183 = vsel %vm1075, %v1166, %v1147
          %v1184 = vsel %vm1076, %v1166, %v1148
          %v1185 = vsel %vm1077, %v1166, %v1149
          %v1186 = vsel %vm1078, %v1166, %v1150
          %v1187 = vsel %vm1079, %v1166, %v1151
          %v1188 = vsel %vm1080, %v1166, %v1152
          %v1189 = vsel %vm1081, %v1166, %v1153
          %v1190 = vsel %vm1082, %v1166, %v1154
          %v1191 = vsel %vm1083, %v1166, %v1155
          %v1192 = vsel %vm1084, %v1166, %v1156
          %v1193 = vsel %vm1085, %v1166, %v1157
          %v1194 = vsel %vm1086, %v1166, %v1158
          %v1195 = vsel %vm1087, %v1166, %v1159
          %v1196 = vsel %vm1088, %v1166, %v1160
          %v1197 = vsel %vm1089, %v1166, %v1161
          %v1198 = vsel %vm1090, %v1166, %v1162
          %1199 = vmatprep.subr.mxu0 0.0
          %1200 = vmatpush1.msra.mxu0 %v1182
          %1201 = vmatprep.subr.mxu0 0.0
          %1202 = vmatpush1.msra.mxu0 %v1181
          %1203 = vmatprep.subr.mxu0 0.0
          %1204 = vmatpush1.msra.mxu0 %v1180
          %1205 = vmatprep.subr.mxu0 0.0
          %1206 = vmatpush1.msra.mxu0 %v1179
          %1207 = vmatprep.subr.mxu0 0.0
          %1208 = vmatpush1.msra.mxu0 %v1178
          %1209 = vmatprep.subr.mxu0 0.0
          %1210 = vmatpush1.msra.mxu0 %v1177
          %1211 = vmatprep.subr.mxu0 0.0
          %1212 = vmatpush1.msra.mxu0 %v1176
          %1213 = vmatprep.subr.mxu0 0.0
          %1214 = vmatpush1.msra.mxu0 %v1175
          %1215 = vmatprep.subr.mxu0 0.0
          %1216 = vmatpush1.msra.mxu0 %v1174
          %1217 = vmatprep.subr.mxu0 0.0
          %1218 = vmatpush1.msra.mxu0 %v1173
          %1219 = vmatprep.subr.mxu0 0.0
          %1220 = vmatpush1.msra.mxu0 %v1172
          %1221 = vmatprep.subr.mxu0 0.0
          %1222 = vmatpush1.msra.mxu0 %v1171
          %1223 = vmatprep.subr.mxu0 0.0
          %1224 = vmatpush1.msra.mxu0 %v1170
          %1225 = vmatprep.subr.mxu0 0.0
          %1226 = vmatpush1.msra.mxu0 %v1169
          %1227 = vmatprep.subr.mxu0 0.0
          %1228 = vmatpush1.msra.mxu0 %v1168
          %1229 = vmatprep.subr.mxu0 0.0
          %1230 = vmatpush1.msra.mxu0 %v1167
          %1231 = vmatprep.subr.mxu0 0.0
          %1232 = vmatpush2.msra.mxu0 %v1198
          %1233 = vmatprep.subr.mxu0 0.0
          %1234 = vmatpush2.msra.mxu0 %v1197
          %1235 = vmatprep.subr.mxu0 0.0
          %1236 = vmatpush2.msra.mxu0 %v1196
          %1237 = vmatprep.subr.mxu0 0.0
          %1238 = vmatpush2.msra.mxu0 %v1195
          %1239 = vmatprep.subr.mxu0 0.0
          %1240 = vmatpush2.msra.mxu0 %v1194
          %1241 = vmatprep.subr.mxu0 0.0
          %1242 = vmatpush2.msra.mxu0 %v1193
          %1243 = vmatprep.subr.mxu0 0.0
          %1244 = vmatpush2.msra.mxu0 %v1192
          %1245 = vmatprep.subr.mxu0 0.0
          %1246 = vmatpush2.msra.mxu0 %v1191
          %1247 = vmatprep.subr.mxu0 0.0
          %1248 = vmatpush2.msra.mxu0 %v1190
          %1249 = vmatprep.subr.mxu0 0.0
          %1250 = vmatpush2.msra.mxu0 %v1189
          %1251 = vmatprep.subr.mxu0 0.0
          %1252 = vmatpush2.msra.mxu0 %v1188
          %1253 = vmatprep.subr.mxu0 0.0
          %1254 = vmatpush2.msra.mxu0 %v1187
          %1255 = vmatprep.subr.mxu0 0.0
          %1256 = vmatpush2.msra.mxu0 %v1186
          %1257 = vmatprep.subr.mxu0 0.0
          %1258 = vmatpush2.msra.mxu0 %v1185
          %1259 = vmatprep.subr.mxu0 0.0
          %1260 = vmatpush2.msra.mxu0 %v1184
          %1261 = vmatprep.subr.mxu0 0.0
          %1262 = vmatpush2.msra.mxu0 %v1183
          %1263 = vmatprep.mubr.f32.mxu0 %v400
          %1264 = vmatmul.mubr.f32.gmra.mxu0 %v396
          %v1265 = vpop.f32.mrf.mxu0
          %v1266 = vadd.f32 0.0, %v1265
          %v1267 = vpop.f32.mrf.mxu0
          %1268 = vdwg.mxu0
          %v1269 = vld [vmem:[%s313 + $0x3] sm:$0x1]
          %v1270 = vadd.f32 %v1269, %v1266
          %1271 = vst [vmem:[%s313 + $0x3] sm:$0x1] %v1270
          %v1272 = vlaneseq
          %v1273 = vshrl.u32 %v1272, 7
          %v1274 = vsub.s32 4, %v1273
          %v1275 = vrot.slane %v382, %v1274
          %vm1276 = vcmp.eq.s32.totalorder %v317, %v1275
          %vm1277 = vcmp.eq.s32.totalorder %v318, %v1275
          %vm1278 = vcmp.eq.s32.totalorder %v319, %v1275
          %vm1279 = vcmp.eq.s32.totalorder %v320, %v1275
          %vm1280 = vcmp.eq.s32.totalorder %v321, %v1275
          %vm1281 = vcmp.eq.s32.totalorder %v322, %v1275
          %vm1282 = vcmp.eq.s32.totalorder %v323, %v1275
          %vm1283 = vcmp.eq.s32.totalorder %v324, %v1275
          %vm1284 = vcmp.eq.s32.totalorder %v325, %v1275
          %vm1285 = vcmp.eq.s32.totalorder %v326, %v1275
          %vm1286 = vcmp.eq.s32.totalorder %v327, %v1275
          %vm1287 = vcmp.eq.s32.totalorder %v328, %v1275
          %vm1288 = vcmp.eq.s32.totalorder %v329, %v1275
          %vm1289 = vcmp.eq.s32.totalorder %v330, %v1275
          %vm1290 = vcmp.eq.s32.totalorder %v331, %v1275
          %vm1291 = vcmp.eq.s32.totalorder %v332, %v1275
          %vm1292 = vcmp.eq.s32.totalorder %v333, %v1275
          %vm1293 = vcmp.eq.s32.totalorder %v334, %v1275
          %vm1294 = vcmp.eq.s32.totalorder %v335, %v1275
          %vm1295 = vcmp.eq.s32.totalorder %v336, %v1275
          %vm1296 = vcmp.eq.s32.totalorder %v337, %v1275
          %vm1297 = vcmp.eq.s32.totalorder %v338, %v1275
          %vm1298 = vcmp.eq.s32.totalorder %v339, %v1275
          %vm1299 = vcmp.eq.s32.totalorder %v340, %v1275
          %vm1300 = vcmp.eq.s32.totalorder %v341, %v1275
          %vm1301 = vcmp.eq.s32.totalorder %v342, %v1275
          %vm1302 = vcmp.eq.s32.totalorder %v343, %v1275
          %vm1303 = vcmp.eq.s32.totalorder %v344, %v1275
          %vm1304 = vcmp.eq.s32.totalorder %v345, %v1275
          %vm1305 = vcmp.eq.s32.totalorder %v346, %v1275
          %vm1306 = vcmp.eq.s32.totalorder %v347, %v1275
          %vm1307 = vcmp.eq.s32.totalorder %v348, %v1275
          %v1308 = vlaneseq
          %v1309 = vshrl.u32 %v1308, 7
          %v1310 = vsub.s32 4, %v1309
          %v1311 = vrot.slane %v439, %v1310
          %vm1312 = vcmp.eq.s32.totalorder %v317, %v1311
          %vm1313 = vcmp.eq.s32.totalorder %v318, %v1311
          %vm1314 = vcmp.eq.s32.totalorder %v319, %v1311
          %vm1315 = vcmp.eq.s32.totalorder %v320, %v1311
          %vm1316 = vcmp.eq.s32.totalorder %v321, %v1311
          %vm1317 = vcmp.eq.s32.totalorder %v322, %v1311
          %vm1318 = vcmp.eq.s32.totalorder %v323, %v1311
          %vm1319 = vcmp.eq.s32.totalorder %v324, %v1311
          %vm1320 = vcmp.eq.s32.totalorder %v325, %v1311
          %vm1321 = vcmp.eq.s32.totalorder %v326, %v1311
          %vm1322 = vcmp.eq.s32.totalorder %v327, %v1311
          %vm1323 = vcmp.eq.s32.totalorder %v328, %v1311
          %vm1324 = vcmp.eq.s32.totalorder %v329, %v1311
          %vm1325 = vcmp.eq.s32.totalorder %v330, %v1311
          %vm1326 = vcmp.eq.s32.totalorder %v331, %v1311
          %vm1327 = vcmp.eq.s32.totalorder %v332, %v1311
          %vm1328 = vcmp.eq.s32.totalorder %v333, %v1311
          %vm1329 = vcmp.eq.s32.totalorder %v334, %v1311
          %vm1330 = vcmp.eq.s32.totalorder %v335, %v1311
          %vm1331 = vcmp.eq.s32.totalorder %v336, %v1311
          %vm1332 = vcmp.eq.s32.totalorder %v337, %v1311
          %vm1333 = vcmp.eq.s32.totalorder %v338, %v1311
          %vm1334 = vcmp.eq.s32.totalorder %v339, %v1311
          %vm1335 = vcmp.eq.s32.totalorder %v340, %v1311
          %vm1336 = vcmp.eq.s32.totalorder %v341, %v1311
          %vm1337 = vcmp.eq.s32.totalorder %v342, %v1311
          %vm1338 = vcmp.eq.s32.totalorder %v343, %v1311
          %vm1339 = vcmp.eq.s32.totalorder %v344, %v1311
          %vm1340 = vcmp.eq.s32.totalorder %v345, %v1311
          %vm1341 = vcmp.eq.s32.totalorder %v346, %v1311
          %vm1342 = vcmp.eq.s32.totalorder %v347, %v1311
          %vm1343 = vcmp.eq.s32.totalorder %v348, %v1311
          %v1344 = vlaneseq
          %v1345 = vshrl.u32 %v1344, 7
          %v1346 = vsub.s32 4, %v1345
          %v1347 = vrot.slane %v381, %v1346
          %v1348 = vsel %vm1312, %v1347, 0.0
          %v1349 = vsel %vm1313, %v1347, 0.0
          %v1350 = vsel %vm1314, %v1347, 0.0
          %v1351 = vsel %vm1315, %v1347, 0.0
          %v1352 = vsel %vm1316, %v1347, 0.0
          %v1353 = vsel %vm1317, %v1347, 0.0
          %v1354 = vsel %vm1318, %v1347, 0.0
          %v1355 = vsel %vm1319, %v1347, 0.0
          %v1356 = vsel %vm1320, %v1347, 0.0
          %v1357 = vsel %vm1321, %v1347, 0.0
          %v1358 = vsel %vm1322, %v1347, 0.0
          %v1359 = vsel %vm1323, %v1347, 0.0
          %v1360 = vsel %vm1324, %v1347, 0.0
          %v1361 = vsel %vm1325, %v1347, 0.0
          %v1362 = vsel %vm1326, %v1347, 0.0
          %v1363 = vsel %vm1327, %v1347, 0.0
          %v1364 = vsel %vm1328, %v1347, 0.0
          %v1365 = vsel %vm1329, %v1347, 0.0
          %v1366 = vsel %vm1330, %v1347, 0.0
          %v1367 = vsel %vm1331, %v1347, 0.0
          %v1368 = vsel %vm1332, %v1347, 0.0
          %v1369 = vsel %vm1333, %v1347, 0.0
          %v1370 = vsel %vm1334, %v1347, 0.0
          %v1371 = vsel %vm1335, %v1347, 0.0
          %v1372 = vsel %vm1336, %v1347, 0.0
          %v1373 = vsel %vm1337, %v1347, 0.0
          %v1374 = vsel %vm1338, %v1347, 0.0
          %v1375 = vsel %vm1339, %v1347, 0.0
          %v1376 = vsel %vm1340, %v1347, 0.0
          %v1377 = vsel %vm1341, %v1347, 0.0
          %v1378 = vsel %vm1342, %v1347, 0.0
          %v1379 = vsel %vm1343, %v1347, 0.0
          %v1380 = vlaneseq
          %v1381 = vshrl.u32 %v1380, 7
          %v1382 = vsub.s32 4, %v1381
          %v1383 = vrot.slane %v379, %v1382
          %v1384 = vsel %vm1276, %v1383, %v1348
          %v1385 = vsel %vm1277, %v1383, %v1349
          %v1386 = vsel %vm1278, %v1383, %v1350
          %v1387 = vsel %vm1279, %v1383, %v1351
          %v1388 = vsel %vm1280, %v1383, %v1352
          %v1389 = vsel %vm1281, %v1383, %v1353
          %v1390 = vsel %vm1282, %v1383, %v1354
          %v1391 = vsel %vm1283, %v1383, %v1355
          %v1392 = vsel %vm1284, %v1383, %v1356
          %v1393 = vsel %vm1285, %v1383, %v1357
          %v1394 = vsel %vm1286, %v1383, %v1358
          %v1395 = vsel %vm1287, %v1383, %v1359
          %v1396 = vsel %vm1288, %v1383, %v1360
          %v1397 = vsel %vm1289, %v1383, %v1361
          %v1398 = vsel %vm1290, %v1383, %v1362
          %v1399 = vsel %vm1291, %v1383, %v1363
          %v1400 = vsel %vm1292, %v1383, %v1364
          %v1401 = vsel %vm1293, %v1383, %v1365
          %v1402 = vsel %vm1294, %v1383, %v1366
          %v1403 = vsel %vm1295, %v1383, %v1367
          %v1404 = vsel %vm1296, %v1383, %v1368
          %v1405 = vsel %vm1297, %v1383, %v1369
          %v1406 = vsel %vm1298, %v1383, %v1370
          %v1407 = vsel %vm1299, %v1383, %v1371
          %v1408 = vsel %vm1300, %v1383, %v1372
          %v1409 = vsel %vm1301, %v1383, %v1373
          %v1410 = vsel %vm1302, %v1383, %v1374
          %v1411 = vsel %vm1303, %v1383, %v1375
          %v1412 = vsel %vm1304, %v1383, %v1376
          %v1413 = vsel %vm1305, %v1383, %v1377
          %v1414 = vsel %vm1306, %v1383, %v1378
          %v1415 = vsel %vm1307, %v1383, %v1379
          %1416 = vmatprep.subr.mxu0 0.0
          %1417 = vmatpush1.msra.mxu0 %v1399
          %1418 = vmatprep.subr.mxu0 0.0
          %1419 = vmatpush1.msra.mxu0 %v1398
          %1420 = vmatprep.subr.mxu0 0.0
          %1421 = vmatpush1.msra.mxu0 %v1397
          %1422 = vmatprep.subr.mxu0 0.0
          %1423 = vmatpush1.msra.mxu0 %v1396
          %1424 = vmatprep.subr.mxu0 0.0
          %1425 = vmatpush1.msra.mxu0 %v1395
          %1426 = vmatprep.subr.mxu0 0.0
          %1427 = vmatpush1.msra.mxu0 %v1394
          %1428 = vmatprep.subr.mxu0 0.0
          %1429 = vmatpush1.msra.mxu0 %v1393
          %1430 = vmatprep.subr.mxu0 0.0
          %1431 = vmatpush1.msra.mxu0 %v1392
          %1432 = vmatprep.subr.mxu0 0.0
          %1433 = vmatpush1.msra.mxu0 %v1391
          %1434 = vmatprep.subr.mxu0 0.0
          %1435 = vmatpush1.msra.mxu0 %v1390
          %1436 = vmatprep.subr.mxu0 0.0
          %1437 = vmatpush1.msra.mxu0 %v1389
          %1438 = vmatprep.subr.mxu0 0.0
          %1439 = vmatpush1.msra.mxu0 %v1388
          %1440 = vmatprep.subr.mxu0 0.0
          %1441 = vmatpush1.msra.mxu0 %v1387
          %1442 = vmatprep.subr.mxu0 0.0
          %1443 = vmatpush1.msra.mxu0 %v1386
          %1444 = vmatprep.subr.mxu0 0.0
          %1445 = vmatpush1.msra.mxu0 %v1385
          %1446 = vmatprep.subr.mxu0 0.0
          %1447 = vmatpush1.msra.mxu0 %v1384
          %1448 = vmatprep.subr.mxu0 0.0
          %1449 = vmatpush2.msra.mxu0 %v1415
          %1450 = vmatprep.subr.mxu0 0.0
          %1451 = vmatpush2.msra.mxu0 %v1414
          %1452 = vmatprep.subr.mxu0 0.0
          %1453 = vmatpush2.msra.mxu0 %v1413
          %1454 = vmatprep.subr.mxu0 0.0
          %1455 = vmatpush2.msra.mxu0 %v1412
          %1456 = vmatprep.subr.mxu0 0.0
          %1457 = vmatpush2.msra.mxu0 %v1411
          %1458 = vmatprep.subr.mxu0 0.0
          %1459 = vmatpush2.msra.mxu0 %v1410
          %1460 = vmatprep.subr.mxu0 0.0
          %1461 = vmatpush2.msra.mxu0 %v1409
          %1462 = vmatprep.subr.mxu0 0.0
          %1463 = vmatpush2.msra.mxu0 %v1408
          %1464 = vmatprep.subr.mxu0 0.0
          %1465 = vmatpush2.msra.mxu0 %v1407
          %1466 = vmatprep.subr.mxu0 0.0
          %1467 = vmatpush2.msra.mxu0 %v1406
          %1468 = vmatprep.subr.mxu0 0.0
          %1469 = vmatpush2.msra.mxu0 %v1405
          %1470 = vmatprep.subr.mxu0 0.0
          %1471 = vmatpush2.msra.mxu0 %v1404
          %1472 = vmatprep.subr.mxu0 0.0
          %1473 = vmatpush2.msra.mxu0 %v1403
          %1474 = vmatprep.subr.mxu0 0.0
          %1475 = vmatpush2.msra.mxu0 %v1402
          %1476 = vmatprep.subr.mxu0 0.0
          %1477 = vmatpush2.msra.mxu0 %v1401
          %1478 = vmatprep.subr.mxu0 0.0
          %1479 = vmatpush2.msra.mxu0 %v1400
          %1480 = vmatprep.mubr.f32.mxu0 %v400
          %1481 = vmatmul.mubr.f32.gmra.mxu0 %v396
          %v1482 = vpop.f32.mrf.mxu0
          %v1483 = vadd.f32 0.0, %v1482
          %v1484 = vpop.f32.mrf.mxu0
          %1485 = vdwg.mxu0
          %v1486 = vld [vmem:[%s313 + $0x4] sm:$0x1]
          %v1487 = vadd.f32 %v1486, %v1483
          %1488 = vst [vmem:[%s313 + $0x4] sm:$0x1] %v1487
          %v1489 = vlaneseq
          %v1490 = vshrl.u32 %v1489, 7
          %v1491 = vsub.s32 5, %v1490
          %v1492 = vrot.slane %v382, %v1491
          %vm1493 = vcmp.eq.s32.totalorder %v317, %v1492
          %vm1494 = vcmp.eq.s32.totalorder %v318, %v1492
          %vm1495 = vcmp.eq.s32.totalorder %v319, %v1492
          %vm1496 = vcmp.eq.s32.totalorder %v320, %v1492
          %vm1497 = vcmp.eq.s32.totalorder %v321, %v1492
          %vm1498 = vcmp.eq.s32.totalorder %v322, %v1492
          %vm1499 = vcmp.eq.s32.totalorder %v323, %v1492
          %vm1500 = vcmp.eq.s32.totalorder %v324, %v1492
          %vm1501 = vcmp.eq.s32.totalorder %v325, %v1492
          %vm1502 = vcmp.eq.s32.totalorder %v326, %v1492
          %vm1503 = vcmp.eq.s32.totalorder %v327, %v1492
          %vm1504 = vcmp.eq.s32.totalorder %v328, %v1492
          %vm1505 = vcmp.eq.s32.totalorder %v329, %v1492
          %vm1506 = vcmp.eq.s32.totalorder %v330, %v1492
          %vm1507 = vcmp.eq.s32.totalorder %v331, %v1492
          %vm1508 = vcmp.eq.s32.totalorder %v332, %v1492
          %vm1509 = vcmp.eq.s32.totalorder %v333, %v1492
          %vm1510 = vcmp.eq.s32.totalorder %v334, %v1492
          %vm1511 = vcmp.eq.s32.totalorder %v335, %v1492
          %vm1512 = vcmp.eq.s32.totalorder %v336, %v1492
          %vm1513 = vcmp.eq.s32.totalorder %v337, %v1492
          %vm1514 = vcmp.eq.s32.totalorder %v338, %v1492
          %vm1515 = vcmp.eq.s32.totalorder %v339, %v1492
          %vm1516 = vcmp.eq.s32.totalorder %v340, %v1492
          %vm1517 = vcmp.eq.s32.totalorder %v341, %v1492
          %vm1518 = vcmp.eq.s32.totalorder %v342, %v1492
          %vm1519 = vcmp.eq.s32.totalorder %v343, %v1492
          %vm1520 = vcmp.eq.s32.totalorder %v344, %v1492
          %vm1521 = vcmp.eq.s32.totalorder %v345, %v1492
          %vm1522 = vcmp.eq.s32.totalorder %v346, %v1492
          %vm1523 = vcmp.eq.s32.totalorder %v347, %v1492
          %vm1524 = vcmp.eq.s32.totalorder %v348, %v1492
          %v1525 = vlaneseq
          %v1526 = vshrl.u32 %v1525, 7
          %v1527 = vsub.s32 5, %v1526
          %v1528 = vrot.slane %v439, %v1527
          %vm1529 = vcmp.eq.s32.totalorder %v317, %v1528
          %vm1530 = vcmp.eq.s32.totalorder %v318, %v1528
          %vm1531 = vcmp.eq.s32.totalorder %v319, %v1528
          %vm1532 = vcmp.eq.s32.totalorder %v320, %v1528
          %vm1533 = vcmp.eq.s32.totalorder %v321, %v1528
          %vm1534 = vcmp.eq.s32.totalorder %v322, %v1528
          %vm1535 = vcmp.eq.s32.totalorder %v323, %v1528
          %vm1536 = vcmp.eq.s32.totalorder %v324, %v1528
          %vm1537 = vcmp.eq.s32.totalorder %v325, %v1528
          %vm1538 = vcmp.eq.s32.totalorder %v326, %v1528
          %vm1539 = vcmp.eq.s32.totalorder %v327, %v1528
          %vm1540 = vcmp.eq.s32.totalorder %v328, %v1528
          %vm1541 = vcmp.eq.s32.totalorder %v329, %v1528
          %vm1542 = vcmp.eq.s32.totalorder %v330, %v1528
          %vm1543 = vcmp.eq.s32.totalorder %v331, %v1528
          %vm1544 = vcmp.eq.s32.totalorder %v332, %v1528
          %vm1545 = vcmp.eq.s32.totalorder %v333, %v1528
          %vm1546 = vcmp.eq.s32.totalorder %v334, %v1528
          %vm1547 = vcmp.eq.s32.totalorder %v335, %v1528
          %vm1548 = vcmp.eq.s32.totalorder %v336, %v1528
          %vm1549 = vcmp.eq.s32.totalorder %v337, %v1528
          %vm1550 = vcmp.eq.s32.totalorder %v338, %v1528
          %vm1551 = vcmp.eq.s32.totalorder %v339, %v1528
          %vm1552 = vcmp.eq.s32.totalorder %v340, %v1528
          %vm1553 = vcmp.eq.s32.totalorder %v341, %v1528
          %vm1554 = vcmp.eq.s32.totalorder %v342, %v1528
          %vm1555 = vcmp.eq.s32.totalorder %v343, %v1528
          %vm1556 = vcmp.eq.s32.totalorder %v344, %v1528
          %vm1557 = vcmp.eq.s32.totalorder %v345, %v1528
          %vm1558 = vcmp.eq.s32.totalorder %v346, %v1528
          %vm1559 = vcmp.eq.s32.totalorder %v347, %v1528
          %vm1560 = vcmp.eq.s32.totalorder %v348, %v1528
          %v1561 = vlaneseq
          %v1562 = vshrl.u32 %v1561, 7
          %v1563 = vsub.s32 5, %v1562
          %v1564 = vrot.slane %v381, %v1563
          %v1565 = vsel %vm1529, %v1564, 0.0
          %v1566 = vsel %vm1530, %v1564, 0.0
          %v1567 = vsel %vm1531, %v1564, 0.0
          %v1568 = vsel %vm1532, %v1564, 0.0
          %v1569 = vsel %vm1533, %v1564, 0.0
          %v1570 = vsel %vm1534, %v1564, 0.0
          %v1571 = vsel %vm1535, %v1564, 0.0
          %v1572 = vsel %vm1536, %v1564, 0.0
          %v1573 = vsel %vm1537, %v1564, 0.0
          %v1574 = vsel %vm1538, %v1564, 0.0
          %v1575 = vsel %vm1539, %v1564, 0.0
          %v1576 = vsel %vm1540, %v1564, 0.0
          %v1577 = vsel %vm1541, %v1564, 0.0
          %v1578 = vsel %vm1542, %v1564, 0.0
          %v1579 = vsel %vm1543, %v1564, 0.0
          %v1580 = vsel %vm1544, %v1564, 0.0
          %v1581 = vsel %vm1545, %v1564, 0.0
          %v1582 = vsel %vm1546, %v1564, 0.0
          %v1583 = vsel %vm1547, %v1564, 0.0
          %v1584 = vsel %vm1548, %v1564, 0.0
          %v1585 = vsel %vm1549, %v1564, 0.0
          %v1586 = vsel %vm1550, %v1564, 0.0
          %v1587 = vsel %vm1551, %v1564, 0.0
          %v1588 = vsel %vm1552, %v1564, 0.0
          %v1589 = vsel %vm1553, %v1564, 0.0
          %v1590 = vsel %vm1554, %v1564, 0.0
          %v1591 = vsel %vm1555, %v1564, 0.0
          %v1592 = vsel %vm1556, %v1564, 0.0
          %v1593 = vsel %vm1557, %v1564, 0.0
          %v1594 = vsel %vm1558, %v1564, 0.0
          %v1595 = vsel %vm1559, %v1564, 0.0
          %v1596 = vsel %vm1560, %v1564, 0.0
          %v1597 = vlaneseq
          %v1598 = vshrl.u32 %v1597, 7
          %v1599 = vsub.s32 5, %v1598
          %v1600 = vrot.slane %v379, %v1599
          %v1601 = vsel %vm1493, %v1600, %v1565
          %v1602 = vsel %vm1494, %v1600, %v1566
          %v1603 = vsel %vm1495, %v1600, %v1567
          %v1604 = vsel %vm1496, %v1600, %v1568
          %v1605 = vsel %vm1497, %v1600, %v1569
          %v1606 = vsel %vm1498, %v1600, %v1570
          %v1607 = vsel %vm1499, %v1600, %v1571
          %v1608 = vsel %vm1500, %v1600, %v1572
          %v1609 = vsel %vm1501, %v1600, %v1573
          %v1610 = vsel %vm1502, %v1600, %v1574
          %v1611 = vsel %vm1503, %v1600, %v1575
          %v1612 = vsel %vm1504, %v1600, %v1576
          %v1613 = vsel %vm1505, %v1600, %v1577
          %v1614 = vsel %vm1506, %v1600, %v1578
          %v1615 = vsel %vm1507, %v1600, %v1579
          %v1616 = vsel %vm1508, %v1600, %v1580
          %v1617 = vsel %vm1509, %v1600, %v1581
          %v1618 = vsel %vm1510, %v1600, %v1582
          %v1619 = vsel %vm1511, %v1600, %v1583
          %v1620 = vsel %vm1512, %v1600, %v1584
          %v1621 = vsel %vm1513, %v1600, %v1585
          %v1622 = vsel %vm1514, %v1600, %v1586
          %v1623 = vsel %vm1515, %v1600, %v1587
          %v1624 = vsel %vm1516, %v1600, %v1588
          %v1625 = vsel %vm1517, %v1600, %v1589
          %v1626 = vsel %vm1518, %v1600, %v1590
          %v1627 = vsel %vm1519, %v1600, %v1591
          %v1628 = vsel %vm1520, %v1600, %v1592
          %v1629 = vsel %vm1521, %v1600, %v1593
          %v1630 = vsel %vm1522, %v1600, %v1594
          %v1631 = vsel %vm1523, %v1600, %v1595
          %v1632 = vsel %vm1524, %v1600, %v1596
          %1633 = vmatprep.subr.mxu0 0.0
          %1634 = vmatpush1.msra.mxu0 %v1616
          %1635 = vmatprep.subr.mxu0 0.0
          %1636 = vmatpush1.msra.mxu0 %v1615
          %1637 = vmatprep.subr.mxu0 0.0
          %1638 = vmatpush1.msra.mxu0 %v1614
          %1639 = vmatprep.subr.mxu0 0.0
          %1640 = vmatpush1.msra.mxu0 %v1613
          %1641 = vmatprep.subr.mxu0 0.0
          %1642 = vmatpush1.msra.mxu0 %v1612
          %1643 = vmatprep.subr.mxu0 0.0
          %1644 = vmatpush1.msra.mxu0 %v1611
          %1645 = vmatprep.subr.mxu0 0.0
          %1646 = vmatpush1.msra.mxu0 %v1610
          %1647 = vmatprep.subr.mxu0 0.0
          %1648 = vmatpush1.msra.mxu0 %v1609
          %1649 = vmatprep.subr.mxu0 0.0
          %1650 = vmatpush1.msra.mxu0 %v1608
          %1651 = vmatprep.subr.mxu0 0.0
          %1652 = vmatpush1.msra.mxu0 %v1607
          %1653 = vmatprep.subr.mxu0 0.0
          %1654 = vmatpush1.msra.mxu0 %v1606
          %1655 = vmatprep.subr.mxu0 0.0
          %1656 = vmatpush1.msra.mxu0 %v1605
          %1657 = vmatprep.subr.mxu0 0.0
          %1658 = vmatpush1.msra.mxu0 %v1604
          %1659 = vmatprep.subr.mxu0 0.0
          %1660 = vmatpush1.msra.mxu0 %v1603
          %1661 = vmatprep.subr.mxu0 0.0
          %1662 = vmatpush1.msra.mxu0 %v1602
          %1663 = vmatprep.subr.mxu0 0.0
          %1664 = vmatpush1.msra.mxu0 %v1601
          %1665 = vmatprep.subr.mxu0 0.0
          %1666 = vmatpush2.msra.mxu0 %v1632
          %1667 = vmatprep.subr.mxu0 0.0
          %1668 = vmatpush2.msra.mxu0 %v1631
          %1669 = vmatprep.subr.mxu0 0.0
          %1670 = vmatpush2.msra.mxu0 %v1630
          %1671 = vmatprep.subr.mxu0 0.0
          %1672 = vmatpush2.msra.mxu0 %v1629
          %1673 = vmatprep.subr.mxu0 0.0
          %1674 = vmatpush2.msra.mxu0 %v1628
          %1675 = vmatprep.subr.mxu0 0.0
          %1676 = vmatpush2.msra.mxu0 %v1627
          %1677 = vmatprep.subr.mxu0 0.0
          %1678 = vmatpush2.msra.mxu0 %v1626
          %1679 = vmatprep.subr.mxu0 0.0
          %1680 = vmatpush2.msra.mxu0 %v1625
          %1681 = vmatprep.subr.mxu0 0.0
          %1682 = vmatpush2.msra.mxu0 %v1624
          %1683 = vmatprep.subr.mxu0 0.0
          %1684 = vmatpush2.msra.mxu0 %v1623
          %1685 = vmatprep.subr.mxu0 0.0
          %1686 = vmatpush2.msra.mxu0 %v1622
          %1687 = vmatprep.subr.mxu0 0.0
          %1688 = vmatpush2.msra.mxu0 %v1621
          %1689 = vmatprep.subr.mxu0 0.0
          %1690 = vmatpush2.msra.mxu0 %v1620
          %1691 = vmatprep.subr.mxu0 0.0
          %1692 = vmatpush2.msra.mxu0 %v1619
          %1693 = vmatprep.subr.mxu0 0.0
          %1694 = vmatpush2.msra.mxu0 %v1618
          %1695 = vmatprep.subr.mxu0 0.0
          %1696 = vmatpush2.msra.mxu0 %v1617
          %1697 = vmatprep.mubr.f32.mxu0 %v400
          %1698 = vmatmul.mubr.f32.gmra.mxu0 %v396
          %v1699 = vpop.f32.mrf.mxu0
          %v1700 = vadd.f32 0.0, %v1699
          %v1701 = vpop.f32.mrf.mxu0
          %1702 = vdwg.mxu0
          %v1703 = vld [vmem:[%s313 + $0x5] sm:$0x1]
          %v1704 = vadd.f32 %v1703, %v1700
          %1705 = vst [vmem:[%s313 + $0x5] sm:$0x1] %v1704
          %v1706 = vlaneseq
          %v1707 = vshrl.u32 %v1706, 7
          %v1708 = vsub.s32 6, %v1707
          %v1709 = vrot.slane %v382, %v1708
          %vm1710 = vcmp.eq.s32.totalorder %v317, %v1709
          %vm1711 = vcmp.eq.s32.totalorder %v318, %v1709
          %vm1712 = vcmp.eq.s32.totalorder %v319, %v1709
          %vm1713 = vcmp.eq.s32.totalorder %v320, %v1709
          %vm1714 = vcmp.eq.s32.totalorder %v321, %v1709
          %vm1715 = vcmp.eq.s32.totalorder %v322, %v1709
          %vm1716 = vcmp.eq.s32.totalorder %v323, %v1709
          %vm1717 = vcmp.eq.s32.totalorder %v324, %v1709
          %vm1718 = vcmp.eq.s32.totalorder %v325, %v1709
          %vm1719 = vcmp.eq.s32.totalorder %v326, %v1709
          %vm1720 = vcmp.eq.s32.totalorder %v327, %v1709
          %vm1721 = vcmp.eq.s32.totalorder %v328, %v1709
          %vm1722 = vcmp.eq.s32.totalorder %v329, %v1709
          %vm1723 = vcmp.eq.s32.totalorder %v330, %v1709
          %vm1724 = vcmp.eq.s32.totalorder %v331, %v1709
          %vm1725 = vcmp.eq.s32.totalorder %v332, %v1709
          %vm1726 = vcmp.eq.s32.totalorder %v333, %v1709
          %vm1727 = vcmp.eq.s32.totalorder %v334, %v1709
          %vm1728 = vcmp.eq.s32.totalorder %v335, %v1709
          %vm1729 = vcmp.eq.s32.totalorder %v336, %v1709
          %vm1730 = vcmp.eq.s32.totalorder %v337, %v1709
          %vm1731 = vcmp.eq.s32.totalorder %v338, %v1709
          %vm1732 = vcmp.eq.s32.totalorder %v339, %v1709
          %vm1733 = vcmp.eq.s32.totalorder %v340, %v1709
          %vm1734 = vcmp.eq.s32.totalorder %v341, %v1709
          %vm1735 = vcmp.eq.s32.totalorder %v342, %v1709
          %vm1736 = vcmp.eq.s32.totalorder %v343, %v1709
          %vm1737 = vcmp.eq.s32.totalorder %v344, %v1709
          %vm1738 = vcmp.eq.s32.totalorder %v345, %v1709
          %vm1739 = vcmp.eq.s32.totalorder %v346, %v1709
          %vm1740 = vcmp.eq.s32.totalorder %v347, %v1709
          %vm1741 = vcmp.eq.s32.totalorder %v348, %v1709
          %v1742 = vlaneseq
          %v1743 = vshrl.u32 %v1742, 7
          %v1744 = vsub.s32 6, %v1743
          %v1745 = vrot.slane %v439, %v1744
          %vm1746 = vcmp.eq.s32.totalorder %v317, %v1745
          %vm1747 = vcmp.eq.s32.totalorder %v318, %v1745
          %vm1748 = vcmp.eq.s32.totalorder %v319, %v1745
          %vm1749 = vcmp.eq.s32.totalorder %v320, %v1745
          %vm1750 = vcmp.eq.s32.totalorder %v321, %v1745
          %vm1751 = vcmp.eq.s32.totalorder %v322, %v1745
          %vm1752 = vcmp.eq.s32.totalorder %v323, %v1745
          %vm1753 = vcmp.eq.s32.totalorder %v324, %v1745
          %vm1754 = vcmp.eq.s32.totalorder %v325, %v1745
          %vm1755 = vcmp.eq.s32.totalorder %v326, %v1745
          %vm1756 = vcmp.eq.s32.totalorder %v327, %v1745
          %vm1757 = vcmp.eq.s32.totalorder %v328, %v1745
          %vm1758 = vcmp.eq.s32.totalorder %v329, %v1745
          %vm1759 = vcmp.eq.s32.totalorder %v330, %v1745
          %vm1760 = vcmp.eq.s32.totalorder %v331, %v1745
          %vm1761 = vcmp.eq.s32.totalorder %v332, %v1745
          %vm1762 = vcmp.eq.s32.totalorder %v333, %v1745
          %vm1763 = vcmp.eq.s32.totalorder %v334, %v1745
          %vm1764 = vcmp.eq.s32.totalorder %v335, %v1745
          %vm1765 = vcmp.eq.s32.totalorder %v336, %v1745
          %vm1766 = vcmp.eq.s32.totalorder %v337, %v1745
          %vm1767 = vcmp.eq.s32.totalorder %v338, %v1745
          %vm1768 = vcmp.eq.s32.totalorder %v339, %v1745
          %vm1769 = vcmp.eq.s32.totalorder %v340, %v1745
          %vm1770 = vcmp.eq.s32.totalorder %v341, %v1745
          %vm1771 = vcmp.eq.s32.totalorder %v342, %v1745
          %vm1772 = vcmp.eq.s32.totalorder %v343, %v1745
          %vm1773 = vcmp.eq.s32.totalorder %v344, %v1745
          %vm1774 = vcmp.eq.s32.totalorder %v345, %v1745
          %vm1775 = vcmp.eq.s32.totalorder %v346, %v1745
          %vm1776 = vcmp.eq.s32.totalorder %v347, %v1745
          %vm1777 = vcmp.eq.s32.totalorder %v348, %v1745
          %v1778 = vlaneseq
          %v1779 = vshrl.u32 %v1778, 7
          %v1780 = vsub.s32 6, %v1779
          %v1781 = vrot.slane %v381, %v1780
          %v1782 = vsel %vm1746, %v1781, 0.0
          %v1783 = vsel %vm1747, %v1781, 0.0
          %v1784 = vsel %vm1748, %v1781, 0.0
          %v1785 = vsel %vm1749, %v1781, 0.0
          %v1786 = vsel %vm1750, %v1781, 0.0
          %v1787 = vsel %vm1751, %v1781, 0.0
          %v1788 = vsel %vm1752, %v1781, 0.0
          %v1789 = vsel %vm1753, %v1781, 0.0
          %v1790 = vsel %vm1754, %v1781, 0.0
          %v1791 = vsel %vm1755, %v1781, 0.0
          %v1792 = vsel %vm1756, %v1781, 0.0
          %v1793 = vsel %vm1757, %v1781, 0.0
          %v1794 = vsel %vm1758, %v1781, 0.0
          %v1795 = vsel %vm1759, %v1781, 0.0
          %v1796 = vsel %vm1760, %v1781, 0.0
          %v1797 = vsel %vm1761, %v1781, 0.0
          %v1798 = vsel %vm1762, %v1781, 0.0
          %v1799 = vsel %vm1763, %v1781, 0.0
          %v1800 = vsel %vm1764, %v1781, 0.0
          %v1801 = vsel %vm1765, %v1781, 0.0
          %v1802 = vsel %vm1766, %v1781, 0.0
          %v1803 = vsel %vm1767, %v1781, 0.0
          %v1804 = vsel %vm1768, %v1781, 0.0
          %v1805 = vsel %vm1769, %v1781, 0.0
          %v1806 = vsel %vm1770, %v1781, 0.0
          %v1807 = vsel %vm1771, %v1781, 0.0
          %v1808 = vsel %vm1772, %v1781, 0.0
          %v1809 = vsel %vm1773, %v1781, 0.0
          %v1810 = vsel %vm1774, %v1781, 0.0
          %v1811 = vsel %vm1775, %v1781, 0.0
          %v1812 = vsel %vm1776, %v1781, 0.0
          %v1813 = vsel %vm1777, %v1781, 0.0
          %v1814 = vlaneseq
          %v1815 = vshrl.u32 %v1814, 7
          %v1816 = vsub.s32 6, %v1815
          %v1817 = vrot.slane %v379, %v1816
          %v1818 = vsel %vm1710, %v1817, %v1782
          %v1819 = vsel %vm1711, %v1817, %v1783
          %v1820 = vsel %vm1712, %v1817, %v1784
          %v1821 = vsel %vm1713, %v1817, %v1785
          %v1822 = vsel %vm1714, %v1817, %v1786
          %v1823 = vsel %vm1715, %v1817, %v1787
          %v1824 = vsel %vm1716, %v1817, %v1788
          %v1825 = vsel %vm1717, %v1817, %v1789
          %v1826 = vsel %vm1718, %v1817, %v1790
          %v1827 = vsel %vm1719, %v1817, %v1791
          %v1828 = vsel %vm1720, %v1817, %v1792
          %v1829 = vsel %vm1721, %v1817, %v1793
          %v1830 = vsel %vm1722, %v1817, %v1794
          %v1831 = vsel %vm1723, %v1817, %v1795
          %v1832 = vsel %vm1724, %v1817, %v1796
          %v1833 = vsel %vm1725, %v1817, %v1797
          %v1834 = vsel %vm1726, %v1817, %v1798
          %v1835 = vsel %vm1727, %v1817, %v1799
          %v1836 = vsel %vm1728, %v1817, %v1800
          %v1837 = vsel %vm1729, %v1817, %v1801
          %v1838 = vsel %vm1730, %v1817, %v1802
          %v1839 = vsel %vm1731, %v1817, %v1803
          %v1840 = vsel %vm1732, %v1817, %v1804
          %v1841 = vsel %vm1733, %v1817, %v1805
          %v1842 = vsel %vm1734, %v1817, %v1806
          %v1843 = vsel %vm1735, %v1817, %v1807
          %v1844 = vsel %vm1736, %v1817, %v1808
          %v1845 = vsel %vm1737, %v1817, %v1809
          %v1846 = vsel %vm1738, %v1817, %v1810
          %v1847 = vsel %vm1739, %v1817, %v1811
          %v1848 = vsel %vm1740, %v1817, %v1812
          %v1849 = vsel %vm1741, %v1817, %v1813
          %1850 = vmatprep.subr.mxu0 0.0
          %1851 = vmatpush1.msra.mxu0 %v1833
          %1852 = vmatprep.subr.mxu0 0.0
          %1853 = vmatpush1.msra.mxu0 %v1832
          %1854 = vmatprep.subr.mxu0 0.0
          %1855 = vmatpush1.msra.mxu0 %v1831
          %1856 = vmatprep.subr.mxu0 0.0
          %1857 = vmatpush1.msra.mxu0 %v1830
          %1858 = vmatprep.subr.mxu0 0.0
          %1859 = vmatpush1.msra.mxu0 %v1829
          %1860 = vmatprep.subr.mxu0 0.0
          %1861 = vmatpush1.msra.mxu0 %v1828
          %1862 = vmatprep.subr.mxu0 0.0
          %1863 = vmatpush1.msra.mxu0 %v1827
          %1864 = vmatprep.subr.mxu0 0.0
          %1865 = vmatpush1.msra.mxu0 %v1826
          %1866 = vmatprep.subr.mxu0 0.0
          %1867 = vmatpush1.msra.mxu0 %v1825
          %1868 = vmatprep.subr.mxu0 0.0
          %1869 = vmatpush1.msra.mxu0 %v1824
          %1870 = vmatprep.subr.mxu0 0.0
          %1871 = vmatpush1.msra.mxu0 %v1823
          %1872 = vmatprep.subr.mxu0 0.0
          %1873 = vmatpush1.msra.mxu0 %v1822
          %1874 = vmatprep.subr.mxu0 0.0
          %1875 = vmatpush1.msra.mxu0 %v1821
          %1876 = vmatprep.subr.mxu0 0.0
          %1877 = vmatpush1.msra.mxu0 %v1820
          %1878 = vmatprep.subr.mxu0 0.0
          %1879 = vmatpush1.msra.mxu0 %v1819
          %1880 = vmatprep.subr.mxu0 0.0
          %1881 = vmatpush1.msra.mxu0 %v1818
          %1882 = vmatprep.subr.mxu0 0.0
          %1883 = vmatpush2.msra.mxu0 %v1849
          %1884 = vmatprep.subr.mxu0 0.0
          %1885 = vmatpush2.msra.mxu0 %v1848
          %1886 = vmatprep.subr.mxu0 0.0
          %1887 = vmatpush2.msra.mxu0 %v1847
          %1888 = vmatprep.subr.mxu0 0.0
          %1889 = vmatpush2.msra.mxu0 %v1846
          %1890 = vmatprep.subr.mxu0 0.0
          %1891 = vmatpush2.msra.mxu0 %v1845
          %1892 = vmatprep.subr.mxu0 0.0
          %1893 = vmatpush2.msra.mxu0 %v1844
          %1894 = vmatprep.subr.mxu0 0.0
          %1895 = vmatpush2.msra.mxu0 %v1843
          %1896 = vmatprep.subr.mxu0 0.0
          %1897 = vmatpush2.msra.mxu0 %v1842
          %1898 = vmatprep.subr.mxu0 0.0
          %1899 = vmatpush2.msra.mxu0 %v1841
          %1900 = vmatprep.subr.mxu0 0.0
          %1901 = vmatpush2.msra.mxu0 %v1840
          %1902 = vmatprep.subr.mxu0 0.0
          %1903 = vmatpush2.msra.mxu0 %v1839
          %1904 = vmatprep.subr.mxu0 0.0
          %1905 = vmatpush2.msra.mxu0 %v1838
          %1906 = vmatprep.subr.mxu0 0.0
          %1907 = vmatpush2.msra.mxu0 %v1837
          %1908 = vmatprep.subr.mxu0 0.0
          %1909 = vmatpush2.msra.mxu0 %v1836
          %1910 = vmatprep.subr.mxu0 0.0
          %1911 = vmatpush2.msra.mxu0 %v1835
          %1912 = vmatprep.subr.mxu0 0.0
          %1913 = vmatpush2.msra.mxu0 %v1834
          %1914 = vmatprep.mubr.f32.mxu0 %v400
          %1915 = vmatmul.mubr.f32.gmra.mxu0 %v396
          %v1916 = vpop.f32.mrf.mxu0
          %v1917 = vadd.f32 0.0, %v1916
          %v1918 = vpop.f32.mrf.mxu0
          %1919 = vdwg.mxu0
          %v1920 = vld [vmem:[%s313 + $0x6] sm:$0x1]
          %v1921 = vadd.f32 %v1920, %v1917
          %1922 = vst [vmem:[%s313 + $0x6] sm:$0x1] %v1921
          %v1923 = vlaneseq
          %v1924 = vshrl.u32 %v1923, 7
          %v1925 = vsub.s32 7, %v1924
          %v1926 = vrot.slane %v382, %v1925
          %vm1927 = vcmp.eq.s32.totalorder %v317, %v1926
          %vm1928 = vcmp.eq.s32.totalorder %v318, %v1926
          %vm1929 = vcmp.eq.s32.totalorder %v319, %v1926
          %vm1930 = vcmp.eq.s32.totalorder %v320, %v1926
          %vm1931 = vcmp.eq.s32.totalorder %v321, %v1926
          %vm1932 = vcmp.eq.s32.totalorder %v322, %v1926
          %vm1933 = vcmp.eq.s32.totalorder %v323, %v1926
          %vm1934 = vcmp.eq.s32.totalorder %v324, %v1926
          %vm1935 = vcmp.eq.s32.totalorder %v325, %v1926
          %vm1936 = vcmp.eq.s32.totalorder %v326, %v1926
          %vm1937 = vcmp.eq.s32.totalorder %v327, %v1926
          %vm1938 = vcmp.eq.s32.totalorder %v328, %v1926
          %vm1939 = vcmp.eq.s32.totalorder %v329, %v1926
          %vm1940 = vcmp.eq.s32.totalorder %v330, %v1926
          %vm1941 = vcmp.eq.s32.totalorder %v331, %v1926
          %vm1942 = vcmp.eq.s32.totalorder %v332, %v1926
          %vm1943 = vcmp.eq.s32.totalorder %v333, %v1926
          %vm1944 = vcmp.eq.s32.totalorder %v334, %v1926
          %vm1945 = vcmp.eq.s32.totalorder %v335, %v1926
          %vm1946 = vcmp.eq.s32.totalorder %v336, %v1926
          %vm1947 = vcmp.eq.s32.totalorder %v337, %v1926
          %vm1948 = vcmp.eq.s32.totalorder %v338, %v1926
          %vm1949 = vcmp.eq.s32.totalorder %v339, %v1926
          %vm1950 = vcmp.eq.s32.totalorder %v340, %v1926
          %vm1951 = vcmp.eq.s32.totalorder %v341, %v1926
          %vm1952 = vcmp.eq.s32.totalorder %v342, %v1926
          %vm1953 = vcmp.eq.s32.totalorder %v343, %v1926
          %vm1954 = vcmp.eq.s32.totalorder %v344, %v1926
          %vm1955 = vcmp.eq.s32.totalorder %v345, %v1926
          %vm1956 = vcmp.eq.s32.totalorder %v346, %v1926
          %vm1957 = vcmp.eq.s32.totalorder %v347, %v1926
          %vm1958 = vcmp.eq.s32.totalorder %v348, %v1926
          %v1959 = vlaneseq
          %v1960 = vshrl.u32 %v1959, 7
          %v1961 = vsub.s32 7, %v1960
          %v1962 = vrot.slane %v439, %v1961
          %vm1963 = vcmp.eq.s32.totalorder %v317, %v1962
          %vm1964 = vcmp.eq.s32.totalorder %v318, %v1962
          %vm1965 = vcmp.eq.s32.totalorder %v319, %v1962
          %vm1966 = vcmp.eq.s32.totalorder %v320, %v1962
          %vm1967 = vcmp.eq.s32.totalorder %v321, %v1962
          %vm1968 = vcmp.eq.s32.totalorder %v322, %v1962
          %vm1969 = vcmp.eq.s32.totalorder %v323, %v1962
          %vm1970 = vcmp.eq.s32.totalorder %v324, %v1962
          %vm1971 = vcmp.eq.s32.totalorder %v325, %v1962
          %vm1972 = vcmp.eq.s32.totalorder %v326, %v1962
          %vm1973 = vcmp.eq.s32.totalorder %v327, %v1962
          %vm1974 = vcmp.eq.s32.totalorder %v328, %v1962
          %vm1975 = vcmp.eq.s32.totalorder %v329, %v1962
          %vm1976 = vcmp.eq.s32.totalorder %v330, %v1962
          %vm1977 = vcmp.eq.s32.totalorder %v331, %v1962
          %vm1978 = vcmp.eq.s32.totalorder %v332, %v1962
          %vm1979 = vcmp.eq.s32.totalorder %v333, %v1962
          %vm1980 = vcmp.eq.s32.totalorder %v334, %v1962
          %vm1981 = vcmp.eq.s32.totalorder %v335, %v1962
          %vm1982 = vcmp.eq.s32.totalorder %v336, %v1962
          %vm1983 = vcmp.eq.s32.totalorder %v337, %v1962
          %vm1984 = vcmp.eq.s32.totalorder %v338, %v1962
          %vm1985 = vcmp.eq.s32.totalorder %v339, %v1962
          %vm1986 = vcmp.eq.s32.totalorder %v340, %v1962
          %vm1987 = vcmp.eq.s32.totalorder %v341, %v1962
          %vm1988 = vcmp.eq.s32.totalorder %v342, %v1962
          %vm1989 = vcmp.eq.s32.totalorder %v343, %v1962
          %vm1990 = vcmp.eq.s32.totalorder %v344, %v1962
          %vm1991 = vcmp.eq.s32.totalorder %v345, %v1962
          %vm1992 = vcmp.eq.s32.totalorder %v346, %v1962
          %vm1993 = vcmp.eq.s32.totalorder %v347, %v1962
          %vm1994 = vcmp.eq.s32.totalorder %v348, %v1962
          %v1995 = vlaneseq
          %v1996 = vshrl.u32 %v1995, 7
          %v1997 = vsub.s32 7, %v1996
          %v1998 = vrot.slane %v381, %v1997
          %v1999 = vsel %vm1963, %v1998, 0.0
          %v2000 = vsel %vm1964, %v1998, 0.0
          %v2001 = vsel %vm1965, %v1998, 0.0
          %v2002 = vsel %vm1966, %v1998, 0.0
          %v2003 = vsel %vm1967, %v1998, 0.0
          %v2004 = vsel %vm1968, %v1998, 0.0
          %v2005 = vsel %vm1969, %v1998, 0.0
          %v2006 = vsel %vm1970, %v1998, 0.0
          %v2007 = vsel %vm1971, %v1998, 0.0
          %v2008 = vsel %vm1972, %v1998, 0.0
          %v2009 = vsel %vm1973, %v1998, 0.0
          %v2010 = vsel %vm1974, %v1998, 0.0
          %v2011 = vsel %vm1975, %v1998, 0.0
          %v2012 = vsel %vm1976, %v1998, 0.0
          %v2013 = vsel %vm1977, %v1998, 0.0
          %v2014 = vsel %vm1978, %v1998, 0.0
          %v2015 = vsel %vm1979, %v1998, 0.0
          %v2016 = vsel %vm1980, %v1998, 0.0
          %v2017 = vsel %vm1981, %v1998, 0.0
          %v2018 = vsel %vm1982, %v1998, 0.0
          %v2019 = vsel %vm1983, %v1998, 0.0
          %v2020 = vsel %vm1984, %v1998, 0.0
          %v2021 = vsel %vm1985, %v1998, 0.0
          %v2022 = vsel %vm1986, %v1998, 0.0
          %v2023 = vsel %vm1987, %v1998, 0.0
          %v2024 = vsel %vm1988, %v1998, 0.0
          %v2025 = vsel %vm1989, %v1998, 0.0
          %v2026 = vsel %vm1990, %v1998, 0.0
          %v2027 = vsel %vm1991, %v1998, 0.0
          %v2028 = vsel %vm1992, %v1998, 0.0
          %v2029 = vsel %vm1993, %v1998, 0.0
          %v2030 = vsel %vm1994, %v1998, 0.0
          %v2031 = vlaneseq
          %v2032 = vshrl.u32 %v2031, 7
          %v2033 = vsub.s32 7, %v2032
          %v2034 = vrot.slane %v379, %v2033
          %v2035 = vsel %vm1927, %v2034, %v1999
          %v2036 = vsel %vm1928, %v2034, %v2000
          %v2037 = vsel %vm1929, %v2034, %v2001
          %v2038 = vsel %vm1930, %v2034, %v2002
          %v2039 = vsel %vm1931, %v2034, %v2003
          %v2040 = vsel %vm1932, %v2034, %v2004
          %v2041 = vsel %vm1933, %v2034, %v2005
          %v2042 = vsel %vm1934, %v2034, %v2006
          %v2043 = vsel %vm1935, %v2034, %v2007
          %v2044 = vsel %vm1936, %v2034, %v2008
          %v2045 = vsel %vm1937, %v2034, %v2009
          %v2046 = vsel %vm1938, %v2034, %v2010
          %v2047 = vsel %vm1939, %v2034, %v2011
          %v2048 = vsel %vm1940, %v2034, %v2012
          %v2049 = vsel %vm1941, %v2034, %v2013
          %v2050 = vsel %vm1942, %v2034, %v2014
          %v2051 = vsel %vm1943, %v2034, %v2015
          %v2052 = vsel %vm1944, %v2034, %v2016
          %v2053 = vsel %vm1945, %v2034, %v2017
          %v2054 = vsel %vm1946, %v2034, %v2018
          %v2055 = vsel %vm1947, %v2034, %v2019
          %v2056 = vsel %vm1948, %v2034, %v2020
          %v2057 = vsel %vm1949, %v2034, %v2021
          %v2058 = vsel %vm1950, %v2034, %v2022
          %v2059 = vsel %vm1951, %v2034, %v2023
          %v2060 = vsel %vm1952, %v2034, %v2024
          %v2061 = vsel %vm1953, %v2034, %v2025
          %v2062 = vsel %vm1954, %v2034, %v2026
          %v2063 = vsel %vm1955, %v2034, %v2027
          %v2064 = vsel %vm1956, %v2034, %v2028
          %v2065 = vsel %vm1957, %v2034, %v2029
          %v2066 = vsel %vm1958, %v2034, %v2030
          %2067 = vmatprep.subr.mxu0 0.0
          %2068 = vmatpush1.msra.mxu0 %v2050
          %2069 = vmatprep.subr.mxu0 0.0
          %2070 = vmatpush1.msra.mxu0 %v2049
          %2071 = vmatprep.subr.mxu0 0.0
          %2072 = vmatpush1.msra.mxu0 %v2048
          %2073 = vmatprep.subr.mxu0 0.0
          %2074 = vmatpush1.msra.mxu0 %v2047
          %2075 = vmatprep.subr.mxu0 0.0
          %2076 = vmatpush1.msra.mxu0 %v2046
          %2077 = vmatprep.subr.mxu0 0.0
          %2078 = vmatpush1.msra.mxu0 %v2045
          %2079 = vmatprep.subr.mxu0 0.0
          %2080 = vmatpush1.msra.mxu0 %v2044
          %2081 = vmatprep.subr.mxu0 0.0
          %2082 = vmatpush1.msra.mxu0 %v2043
          %2083 = vmatprep.subr.mxu0 0.0
          %2084 = vmatpush1.msra.mxu0 %v2042
          %2085 = vmatprep.subr.mxu0 0.0
          %2086 = vmatpush1.msra.mxu0 %v2041
          %2087 = vmatprep.subr.mxu0 0.0
          %2088 = vmatpush1.msra.mxu0 %v2040
          %2089 = vmatprep.subr.mxu0 0.0
          %2090 = vmatpush1.msra.mxu0 %v2039
          %2091 = vmatprep.subr.mxu0 0.0
          %2092 = vmatpush1.msra.mxu0 %v2038
          %2093 = vmatprep.subr.mxu0 0.0
          %2094 = vmatpush1.msra.mxu0 %v2037
          %2095 = vmatprep.subr.mxu0 0.0
          %2096 = vmatpush1.msra.mxu0 %v2036
          %2097 = vmatprep.subr.mxu0 0.0
          %2098 = vmatpush1.msra.mxu0 %v2035
          %2099 = vmatprep.subr.mxu0 0.0
          %2100 = vmatpush2.msra.mxu0 %v2066
          %2101 = vmatprep.subr.mxu0 0.0
          %2102 = vmatpush2.msra.mxu0 %v2065
          %2103 = vmatprep.subr.mxu0 0.0
          %2104 = vmatpush2.msra.mxu0 %v2064
          %2105 = vmatprep.subr.mxu0 0.0
          %2106 = vmatpush2.msra.mxu0 %v2063
          %2107 = vmatprep.subr.mxu0 0.0
          %2108 = vmatpush2.msra.mxu0 %v2062
          %2109 = vmatprep.subr.mxu0 0.0
          %2110 = vmatpush2.msra.mxu0 %v2061
          %2111 = vmatprep.subr.mxu0 0.0
          %2112 = vmatpush2.msra.mxu0 %v2060
          %2113 = vmatprep.subr.mxu0 0.0
          %2114 = vmatpush2.msra.mxu0 %v2059
          %2115 = vmatprep.subr.mxu0 0.0
          %2116 = vmatpush2.msra.mxu0 %v2058
          %2117 = vmatprep.subr.mxu0 0.0
          %2118 = vmatpush2.msra.mxu0 %v2057
          %2119 = vmatprep.subr.mxu0 0.0
          %2120 = vmatpush2.msra.mxu0 %v2056
          %2121 = vmatprep.subr.mxu0 0.0
          %2122 = vmatpush2.msra.mxu0 %v2055
          %2123 = vmatprep.subr.mxu0 0.0
          %2124 = vmatpush2.msra.mxu0 %v2054
          %2125 = vmatprep.subr.mxu0 0.0
          %2126 = vmatpush2.msra.mxu0 %v2053
          %2127 = vmatprep.subr.mxu0 0.0
          %2128 = vmatpush2.msra.mxu0 %v2052
          %2129 = vmatprep.subr.mxu0 0.0
          %2130 = vmatpush2.msra.mxu0 %v2051
          %2131 = vmatprep.mubr.f32.mxu0 %v400
          %2132 = vmatmul.mubr.f32.gmra.mxu0 %v396
          %v2133 = vpop.f32.mrf.mxu0
          %v2134 = vadd.f32 0.0, %v2133
          %v2135 = vpop.f32.mrf.mxu0
          %2136 = vdwg.mxu0
          %v2137 = vld [vmem:[%s313 + $0x7] sm:$0x1]
          %v2138 = vadd.f32 %v2137, %v2134
          %2139 = vst [vmem:[%s313 + $0x7] sm:$0x1] %v2138
        $region65: #{tpu_custom_call.1} parent=39 // loop_footer
          %s355 = sadd.s32 1, %s351
        $region66: #{tpu_custom_call.1} parent=39 // loop_footer_branch
          %350 = sbr.rel target = $region62
        $region67: #{tpu_custom_call.1} parent=39 // loop_exit
          _
        %s2140 = sand.u32 %s150, 1
        %s2141 = scalar_lea.sflag [#allocation4], %s2140
        %s2142 = sand.u32 %s150, 1
        %s2143 = smul.addr %s2142, 8
        %s2144 = scalar_lea.vmem [#allocation12], %s2143
        // Predicated region
        $region68: #{tpu_custom_call.1} parent=39 // pred_check
          %p2145 = pneg %p160
        $region69: #{tpu_custom_call.1} parent=39 // pred_check_branch
          %2147 = sbr.rel (%p2145) target = $region71
        $region70: #{tpu_custom_call.1} parent=39 // pred_region
          %s2149 = ssub.s32 128, 128
          %2150 = vsyncadd %s2141, %s2149
          %s2151 = smul.addr %s27, 128
          %s2152 = scalar_lea.hbm %s5, %s2151
          %s2154 = sshll.u32 %s2144, 4
          %s2155 = int_to_ptr.vmem [resolvable:$true] %s2154
          %2157 = dma.vmem_to_hbm [thread:$0]  %s2155, 128, %s2152, %s2141
        $region71: #{tpu_custom_call.1} parent=39 // pred_fallthru
          _
      $region40: #{tpu_custom_call.1} parent=5 // pred_fallthru
        _
      %p2158 = scmp.le.s32.totalorder 2, %s22
      // Predicated region
      $region72: #{tpu_custom_call.1} parent=5 // pred_check
        %p2159 = pneg %p2158
      $region73: #{tpu_custom_call.1} parent=5 // pred_check_branch
        %2161 = sbr.rel (%p2159) target = $region75
      $region74: #{tpu_custom_call.1} parent=5 // pred_region
        %s2162 = ssub.s32 %s22, 2
        // Predicated region
        $region76: #{tpu_custom_call.1} parent=74 // pred_check
          %p2163 = pneg %p166
        $region77: #{tpu_custom_call.1} parent=74 // pred_check_branch
          %2165 = sbr.rel (%p2163) target = $region79
        $region78: #{tpu_custom_call.1} parent=74 // pred_region
          %s2166 = sand.u32 %s151, 1
          %s2167 = scalar_lea.sflag [#allocation4], %s2166
          %s2168 = sand.u32 %s151, 1
          %s2169 = smul.addr %s2168, 8
          %s2170 = scalar_lea.vmem [#allocation12], %s2169
          %2171 = dma.done %s2167, 128
        $region79: #{tpu_custom_call.1} parent=74 // pred_fallthru
          _
      $region75: #{tpu_custom_call.1} parent=5 // pred_fallthru
        _
    $region6: #{tpu_custom_call.1} parent=1 // loop_footer
      %s26 = sadd.s32 1, %s22
    $region7: #{tpu_custom_call.1} parent=1 // loop_footer_branch
      %21 = sbr.rel target = $region3
    $region8: #{tpu_custom_call.1} parent=1 // loop_exit
      _
    %2172 = vsyncpa [#allocation3], 1
    %s2173 = scalar_lea.sflag [#allocation3], 1
    %2174 = vsyncpa %s2173, 1
    %2175 = vsyncpa [#allocation10], 1
    %s2176 = scalar_lea.sflag [#allocation10], 1
    %2177 = vsyncpa %s2176, 1
    %2178 = vsyncpa [#allocation4], 1
    %s2179 = scalar_lea.sflag [#allocation4], 1
    %2180 = vsyncpa %s2179, 1
    %2181 = vsyncpa [#allocation5], 1
    %s2182 = scalar_lea.sflag [#allocation5], 1
    %2183 = vsyncpa %s2182, 1
    %2184 = vsyncpa [#allocation6], 1
    %s2185 = scalar_lea.sflag [#allocation6], 1
    %2186 = vsyncpa %s2185, 1

</llo_original>
